<compile_context>
chip_gen: v7x
topology: tpu7x:2x2x1
jax: 0.10.0
libtpu: 0.0.40
codegen_flags: <defaults>
</compile_context>

<pallas_src>
import jax
import jax.numpy as jnp
import numpy as np
from jax.experimental import pallas as pl
from jax.experimental.pallas import tpu as pltpu

HIGH = jax.lax.Precision.HIGHEST


# ------------------------------------------------------------------ weight prep (once)
def prepare_params(params, hh, wh):
    """One-time (outside jit) conversion of PyTorch-layout weights into banded /
    placement matrices and lane-layout bias patterns used by the kernel."""
    up_w = np.asarray(params["up_w"])          # (ch, cs, 2, 2)
    up_b = np.asarray(params["up_b"])          # (cs,)
    w1 = np.asarray(params["w1"])              # (co, 3cs, 3, 3)
    b1 = np.asarray(params["b1"])
    w2 = np.asarray(params["w2"])              # (co, co, 3, 3)
    b2 = np.asarray(params["b2"])

    ch, cs = up_w.shape[:2]
    co = b1.shape[0]
    cin1 = 3 * cs
    wo = 2 * wh
    wb1 = wo * cin1                            # conv1 input lanes (no W pad)
    wb2 = wo * co                              # conv1 output / conv2 lanes
    bf = jnp.bfloat16

    # conv weights -> (ky, kx, ci, o)
    w1_k = np.transpose(w1, (2, 3, 1, 0))      # (3, 3, cin1, co)
    w2_k = np.transpose(w2, (2, 3, 1, 0))      # (3, 3, co, co)

    def band(w_ky, cin, cout):
        """(wo*cin, wo*cout) banded matrix for one ky: out[x] += in[x+kx-1]@w[kx],
        with W edges clipped (no W padding of the input needed)."""
        m = np.zeros((wo * cin, wo * cout), np.float32)
        for x in range(wo):
            for kx in range(3):
                u = x + kx - 1
                if 0 <= u < wo:
                    m[u * cin:(u + 1) * cin, x * cout:(x + 1) * cout] = w_ky[kx]
        return m

    c1 = np.stack([band(w1_k[ky], cin1, co) for ky in range(3)])   # (3, wb1, wb2)
    c2 = np.stack([band(w2_k[ky], co, co) for ky in range(3)])     # (3, wb2, wb2)

    # channel placement: combined-shortcut lane (x*2cs+c) -> conv1-input lane (x*cin1+c)
    e = np.zeros((wo * 2 * cs, wb1), np.float32)
    for x in range(wo):
        e[x * 2 * cs:(x + 1) * 2 * cs, x * cin1:x * cin1 + 2 * cs] = np.eye(2 * cs)

    # ConvTranspose2d(k=2, s=2) W/channel placement, one matrix per output-row parity a
    def upmat(a):
        m = np.zeros((wh * ch, wb1), np.float32)
        for xh in range(wh):
            for bx in range(2):
                c0 = (2 * xh + bx) * cin1 + 2 * cs
                m[xh * ch:(xh + 1) * ch, c0:c0 + cs] = up_w[:, :, a, bx]
        return m
    g0, g1 = upmat(0), upmat(1)

    bup = np.zeros((1, wb1), np.float32)
    for x in range(wo):
        bup[0, x * cin1 + 2 * cs:x * cin1 + 3 * cs] = up_b
    b1f = np.tile(b1, wo).reshape(1, wb2).astype(np.float32)
    b2f = np.tile(b2, wo).reshape(1, wb2).astype(np.float32)

    return dict(e=jnp.asarray(e, bf), g0=jnp.asarray(g0, bf), g1=jnp.asarray(g1, bf),
                c1=jnp.asarray(c1, bf), c2=jnp.asarray(c2, bf),
                bup=jnp.asarray(bup), b1f=jnp.asarray(b1f), b2f=jnp.asarray(b2f),
                co=int(co))


# --------------------------------------------------------------------------- wrapper
def multi_unet_up(shortcut, shortcut2, h, kp):
    """Forward pass of MultiUNetUp (is_deconv=True). NCHW in / NCHW out."""
    # TODO(synk): is_deconv=False branch (nn.UpsamplingBilinear2d) not implemented.
    n, cs, hs, ws = shortcut.shape
    _, ch, hhs, whs = h.shape
    ho, wo = 2 * hhs, 2 * whs
    co = kp["co"]
    cin1 = 3 * cs
    wb1 = wo * cin1
    wb2 = wo * co

    # F.pad(shortcut, [p, p, p, p]); torch.cat needs matching spatial dims.
    p = (ho - hs) // 2
    assert hs + 2 * p == ho and ws + 2 * p == wo, "odd up/shortcut offset unsupported"
    if p > 0:
        pad = ((0, 0), (0, 0), (p, p), (p, p))
        shortcut = jnp.pad(shortcut, pad)
        shortcut2 = jnp.pad(shortcut2, pad)

    # Batch tile: stack images along the matmul M axis; keep >=2 grid steps
    # when possible so both v7x TensorCores get work.
    if n >= 16:
        bt = 8
    else:
        bt = max(1, n // 2)
    nt = -(-n // bt)
    npad = nt * bt

    sc_cat = jnp.concatenate([shortcut, shortcut2], axis=1)      # (n, 2cs, ho, wo)
    hx = h
    if npad > n:
        sc_cat = jnp.pad(sc_cat, ((0, npad - n), (0, 0), (0, 0), (0, 0)))
        hx = jnp.pad(hx, ((0, npad - n), (0, 0), (0, 0), (0, 0)))

    def to_rows(x):  # NCHW -> (N*H, W*C) lane-dense bf16 slab
        nn, cc, hgt, wid = x.shape
        return jnp.transpose(x, (0, 2, 3, 1)).reshape(nn * hgt, wid * cc).astype(jnp.bfloat16)

    sc_rows = to_rows(sc_cat)        # (npad*ho, wo*2cs) = (., 128)
    h_rows = to_rows(hx)             # (npad*hh, wh*ch)  = (., 64)

    S = ho + 2                       # per-image slab stride (data + 2 H-pad rows)
    R = bt * S                       # slab rows per grid step
    M = R - 2                        # conv output rows per grid step (incl. junk rows)

    # Exact 0/1 row-spread matrices (trace-time constants; depend on the tile size).
    psc = np.zeros((R, bt * ho), np.float32)
    p0 = np.zeros((R, bt * hhs), np.float32)
    p1 = np.zeros((R, bt * hhs), np.float32)
    for b in range(bt):
        for y in range(ho):
            psc[b * S + 1 + y, b * ho + y] = 1.0
        for j in range(hhs):
            p0[b * S + 1 + 2 * j, b * hhs + j] = 1.0
            p1[b * S + 2 + 2 * j, b * hhs + j] = 1.0
    psc = jnp.asarray(psc, jnp.bfloat16)
    p0 = jnp.asarray(p0, jnp.bfloat16)
    p1 = jnp.asarray(p1, jnp.bfloat16)

    weights = (psc, p0, p1, kp["e"], kp["g0"], kp["g1"], kp["c1"], kp["c2"],
               kp["bup"], kp["b1f"], kp["b2f"])

    def kernel(sc_ref, h_ref, psc_ref, p0_ref, p1_ref, e_ref, g0_ref, g1_ref,
               c1_ref, c2_ref, bup_ref, b1_ref, b2_ref, o_ref, xp1_ref, xp2_ref):
        f32, bf16 = jnp.float32, jnp.bfloat16
        sc = sc_ref[...]                      # (bt*ho, 128) bf16
        hv = h_ref[...]                       # (bt*hh, 64)  bf16

        # H-pad row spread (0/1 matrices -> exact copies; bf16 round-trip lossless).
        sc_s = jnp.dot(psc_ref[...], sc, preferred_element_type=f32).astype(bf16)
        h0 = jnp.dot(p0_ref[...], hv, preferred_element_type=f32).astype(bf16)
        h1 = jnp.dot(p1_ref[...], hv, preferred_element_type=f32).astype(bf16)

        # conv1 input slab: channel-concat + ConvTranspose2d realized as matmuls.
        body = jnp.dot(sc_s, e_ref[...], preferred_element_type=f32)
        body = body + jnp.dot(h0, g0_ref[...], preferred_element_type=f32)
        body = body + jnp.dot(h1, g1_ref[...], preferred_element_type=f32)
        rr = jax.lax.broadcasted_iota(jnp.int32, (R, 1), 0) % S
        body = body + jnp.where((rr >= 1) & (rr <= ho), bup_ref[...], 0.0)
        xp1_ref[...] = body.astype(bf16)      # pad rows are exact zeros

        # conv1: 3x3 (pad=1) + ReLU as 3 banded matmuls over row-shifted bf16 slab.
        acc1 = jnp.zeros((M, wb2), f32)
        for ky in range(3):
            acc1 = acc1 + jnp.dot(xp1_ref[ky:ky + M, :], c1_ref[ky],
                                  preferred_element_type=f32)
        y1 = jnp.maximum(acc1 + b1_ref[...], 0.0)
        ar = jax.lax.broadcasted_iota(jnp.int32, (M, 1), 0) % S
        y1 = jnp.where(ar < ho, y1, 0.0)      # zero the inter-image junk rows

        zrow = jnp.zeros((1, wb2), bf16)
        xp2_ref[0:1, :] = zrow                # two boundary pad rows (re-zeroed per
        xp2_ref[R - 1:R, :] = zrow            # step: cheap and megacore-safe)
        xp2_ref[1:R - 1, :] = y1.astype(bf16)

        # conv2: same structure; 128-lane slab in, 128-lane slab out.
        acc2 = jnp.zeros((M, wb2), f32)
        for ky in range(3):
            acc2 = acc2 + jnp.dot(xp2_ref[ky:ky + M, :], c2_ref[ky],
                                  preferred_element_type=f32)
        y2 = jnp.maximum(acc2 + b2_ref[...], 0.0)

        # Extract the valid rows of each image into the compact lane-dense output.
        for b in range(bt):
            o_ref[b * ho:(b + 1) * ho, :] = y2[b * S:b * S + ho, :]

    def full_spec(x):
        nd = x.ndim
        return pl.BlockSpec(x.shape, lambda i, _nd=nd: (0,) * _nd)

    macs_tile = (R * (bt * ho) * (2 * cs * wo)
                 + 2 * R * (bt * hhs) * (ch * whs)
                 + R * (2 * cs * wo) * wb1
                 + 2 * R * (ch * whs) * wb1
                 + 3 * M * wb1 * wb2
                 + 3 * M * wb2 * wb2)
    wbytes = sum(int(np.prod(w.shape)) * w.dtype.itemsize for w in weights)
    cost = pl.CostEstimate(
        flops=int(2 * macs_tile * nt),
        transcendentals=0,
        bytes_accessed=int(sc_rows.size * 2 + h_rows.size * 2
                           + npad * ho * wb2 * 4 + wbytes))

    out_rows = pl.pallas_call(
        kernel,
        out_shape=jax.ShapeDtypeStruct((npad * ho, wb2), jnp.float32),
        grid=(nt,),
        in_specs=[
            pl.BlockSpec((bt * ho, 2 * cs * wo), lambda i: (i, 0)),
            pl.BlockSpec((bt * hhs, ch * whs), lambda i: (i, 0)),
        ] + [full_spec(w) for w in weights],
        out_specs=pl.BlockSpec((bt * ho, wb2), lambda i: (i, 0)),
        scratch_shapes=[
            pltpu.VMEM((R, wb1), jnp.bfloat16),
            pltpu.VMEM((R, wb2), jnp.bfloat16),
        ],
        compiler_params=pltpu.CompilerParams(dimension_semantics=("parallel",)),
        cost_estimate=cost,
    )(sc_rows, h_rows, *weights)

    out = out_rows[:n * ho].reshape(n, ho, wo, co)
    return jnp.transpose(out, (0, 3, 1, 2))


# --------------------------------------------------------------------------- reference
def reference(shortcut, shortcut2, h, params):
    s = jnp.transpose(shortcut, (0, 2, 3, 1))
    s2 = jnp.transpose(shortcut2, (0, 2, 3, 1))
    hn = jnp.transpose(h, (0, 2, 3, 1))
    n, hh, wh, _ = hn.shape
    cs = params["up_w"].shape[1]

    up = jnp.einsum("nhwc,coij->nhiwjo", hn, params["up_w"], precision=HIGH)
    up = up.reshape(n, 2 * hh, 2 * wh, cs) + params["up_b"]

    p = (up.shape[1] - s.shape[1]) // 2
    pad = ((0, 0), (p, p), (p, p), (0, 0))
    s = jnp.pad(s, pad)
    s2 = jnp.pad(s2, pad)
    x = jnp.concatenate([s, s2, up], axis=-1)

    def conv(x, w_oihw, b):
        w = jnp.transpose(w_oihw, (2, 3, 1, 0))
        y = jax.lax.conv_general_dilated(
            x, w, (1, 1), "SAME",
            dimension_numbers=("NHWC", "HWIO", "NHWC"), precision=HIGH)
        return jnp.maximum(y + b, 0.0)

    y = conv(x, params["w1"], params["b1"])
    y = conv(y, params["w2"], params["b2"])
    return jnp.transpose(y, (0, 3, 1, 2))


# --------------------------------------------------------------------------- main
if __name__ == "__main__":
    # Module config: MultiUNetUp(shortcut_ch=4, h_ch=8, out_size=8, is_deconv=True)
    shortcut_ch, h_ch, out_size = 4, 8, 8
    N, Hh, Wh = 2, 8, 8                       # h spatial; shortcuts are 2x (16x16)

    key = jax.random.PRNGKey(0)
    ks = jax.random.split(key, 10)
    sc = 0.1

    params = dict(
        up_w=jax.random.normal(ks[0], (h_ch, shortcut_ch, 2, 2), jnp.float32) * sc,
        up_b=jax.random.normal(ks[1], (shortcut_ch,), jnp.float32) * sc,
        w1=jax.random.normal(ks[2], (out_size, 3 * shortcut_ch, 3, 3), jnp.float32) * sc,
        b1=jax.random.normal(ks[3], (out_size,), jnp.float32) * sc,
        w2=jax.random.normal(ks[4], (out_size, out_size, 3, 3), jnp.float32) * sc,
        b2=jax.random.normal(ks[5], (out_size,), jnp.float32) * sc,
    )

    shortcut = jax.random.normal(ks[6], (N, shortcut_ch, 2 * Hh, 2 * Wh), jnp.float32)
    shortcut2 = jax.random.normal(ks[7], (N, shortcut_ch, 2 * Hh, 2 * Wh), jnp.float32)
    h = jax.random.normal(ks[8], (N, h_ch, Hh, Wh), jnp.float32)

    # One-time weight preprocessing (outside jit), then the fused forward.
    kparams = prepare_params(params, Hh, Wh)
    fwd = jax.jit(lambda a, b, c: multi_unet_up(a, b, c, kparams))

    out = jax.block_until_ready(fwd(shortcut, shortcut2, h))
    ref = jax.block_until_ready(reference(shortcut, shortcut2, h, params))

    assert out.shape == (N, out_size, 2 * Hh, 2 * Wh), out.shape
    # Kernel uses bf16 operands with f32 accumulation, so tolerance vs. the
    # f32-HIGHEST reference is relaxed; structural/indexing bugs would produce
    # O(0.1..1) errors, far above this.
    np.testing.assert_allclose(np.asarray(out), np.asarray(ref), atol=5e-2, rtol=5e-2)

    print("KERNEL_OK")
</pallas_src>

<mosaic_0001>
module attributes {stable_mosaic.version = 11 : i64} {
  func.func @kernel(%arg0: i32, %arg1: memref<16x128xbf16, #tpu.memory_space<vmem>>, %arg2: memref<8x64xbf16, #tpu.memory_space<vmem>>, %arg3: memref<18x16xbf16, #tpu.memory_space<vmem>>, %arg4: memref<18x8xbf16, #tpu.memory_space<vmem>>, %arg5: memref<18x8xbf16, #tpu.memory_space<vmem>>, %arg6: memref<128x192xbf16, #tpu.memory_space<vmem>>, %arg7: memref<64x192xbf16, #tpu.memory_space<vmem>>, %arg8: memref<64x192xbf16, #tpu.memory_space<vmem>>, %arg9: memref<3x192x128xbf16, #tpu.memory_space<vmem>>, %arg10: memref<3x128x128xbf16, #tpu.memory_space<vmem>>, %arg11: memref<1x192xf32, #tpu.memory_space<vmem>>, %arg12: memref<1x128xf32, #tpu.memory_space<vmem>>, %arg13: memref<1x128xf32, #tpu.memory_space<vmem>>, %arg14: memref<16x128xf32, #tpu.memory_space<vmem>>, %arg15: memref<18x192xbf16, #tpu.memory_space<vmem>>, %arg16: memref<18x128xbf16, #tpu.memory_space<vmem>>) attributes {dimension_semantics = [#tpu.dimension_semantics<parallel>], iteration_bounds = array<i64: 2>, scalar_prefetch = 0 : i64, scratch_operands = 2 : i64, tpu.core_type = #tpu.core_type<tc>, window_params = [{transform_indices = @transform_0, window_bounds = array<i64: 16, 128>}, {transform_indices = @transform_1, window_bounds = array<i64: 8, 64>}, {pipeline_mode = #tpu.pipeline_mode<synchronous>, transform_indices = @transform_2, window_bounds = array<i64: 18, 16>}, {pipeline_mode = #tpu.pipeline_mode<synchronous>, transform_indices = @transform_3, window_bounds = array<i64: 18, 8>}, {pipeline_mode = #tpu.pipeline_mode<synchronous>, transform_indices = @transform_4, window_bounds = array<i64: 18, 8>}, {pipeline_mode = #tpu.pipeline_mode<synchronous>, transform_indices = @transform_5, window_bounds = array<i64: 128, 192>}, {pipeline_mode = #tpu.pipeline_mode<synchronous>, transform_indices = @transform_6, window_bounds = array<i64: 64, 192>}, {pipeline_mode = #tpu.pipeline_mode<synchronous>, transform_indices = @transform_7, window_bounds = array<i64: 64, 192>}, {pipeline_mode = #tpu.pipeline_mode<synchronous>, transform_indices = @transform_8, window_bounds = array<i64: 3, 192, 128>}, {pipeline_mode = #tpu.pipeline_mode<synchronous>, transform_indices = @transform_9, window_bounds = array<i64: 3, 128, 128>}, {pipeline_mode = #tpu.pipeline_mode<synchronous>, transform_indices = @transform_10, window_bounds = array<i64: 1, 192>}, {pipeline_mode = #tpu.pipeline_mode<synchronous>, transform_indices = @transform_11, window_bounds = array<i64: 1, 128>}, {pipeline_mode = #tpu.pipeline_mode<synchronous>, transform_indices = @transform_12, window_bounds = array<i64: 1, 128>}, {transform_indices = @transform_13, window_bounds = array<i64: 16, 128>}]} {
    %c0 = arith.constant 0 : index
    %c0_0 = arith.constant 0 : index
    %0 = vector.load %arg1[%c0, %c0_0] : memref<16x128xbf16, #tpu.memory_space<vmem>>, vector<16x128xbf16>
    %c0_1 = arith.constant 0 : index
    %c0_2 = arith.constant 0 : index
    %1 = vector.load %arg2[%c0_1, %c0_2] : memref<8x64xbf16, #tpu.memory_space<vmem>>, vector<8x64xbf16>
    %c0_3 = arith.constant 0 : index
    %c0_4 = arith.constant 0 : index
    %2 = vector.load %arg3[%c0_3, %c0_4] : memref<18x16xbf16, #tpu.memory_space<vmem>>, vector<18x16xbf16>
    %cst = arith.constant dense<0.000000e+00> : vector<18x128xf32>
    %3 = tpu.matmul %2, %0, %cst {dimension_numbers = #tpu.dot_dimension_numbers<[1], [0], [0], [1], [0, 0, 1, 1], [], []>} : vector<18x16xbf16>, vector<16x128xbf16>, vector<18x128xf32> -> vector<18x128xf32>
    %4 = arith.truncf %3 : vector<18x128xf32> to vector<18x128xbf16>
    %c0_5 = arith.constant 0 : index
    %c0_6 = arith.constant 0 : index
    %5 = vector.load %arg4[%c0_5, %c0_6] : memref<18x8xbf16, #tpu.memory_space<vmem>>, vector<18x8xbf16>
    %cst_7 = arith.constant dense<0.000000e+00> : vector<18x64xf32>
    %6 = tpu.matmul %5, %1, %cst_7 {dimension_numbers = #tpu.dot_dimension_numbers<[1], [0], [0], [1], [0, 0, 1, 1], [], []>} : vector<18x8xbf16>, vector<8x64xbf16>, vector<18x64xf32> -> vector<18x64xf32>
    %7 = arith.truncf %6 : vector<18x64xf32> to vector<18x64xbf16>
    %c0_8 = arith.constant 0 : index
    %c0_9 = arith.constant 0 : index
    %8 = vector.load %arg5[%c0_8, %c0_9] : memref<18x8xbf16, #tpu.memory_space<vmem>>, vector<18x8xbf16>
    %cst_10 = arith.constant dense<0.000000e+00> : vector<18x64xf32>
    %9 = tpu.matmul %8, %1, %cst_10 {dimension_numbers = #tpu.dot_dimension_numbers<[1], [0], [0], [1], [0, 0, 1, 1], [], []>} : vector<18x8xbf16>, vector<8x64xbf16>, vector<18x64xf32> -> vector<18x64xf32>
    %10 = arith.truncf %9 : vector<18x64xf32> to vector<18x64xbf16>
    %c0_11 = arith.constant 0 : index
    %c0_12 = arith.constant 0 : index
    %11 = vector.load %arg6[%c0_11, %c0_12] : memref<128x192xbf16, #tpu.memory_space<vmem>>, vector<128x192xbf16>
    %cst_13 = arith.constant dense<0.000000e+00> : vector<18x192xf32>
    %12 = tpu.matmul %4, %11, %cst_13 {dimension_numbers = #tpu.dot_dimension_numbers<[1], [0], [0], [1], [0, 0, 1, 1], [], []>} : vector<18x128xbf16>, vector<128x192xbf16>, vector<18x192xf32> -> vector<18x192xf32>
    %c0_14 = arith.constant 0 : index
    %c0_15 = arith.constant 0 : index
    %13 = vector.load %arg7[%c0_14, %c0_15] : memref<64x192xbf16, #tpu.memory_space<vmem>>, vector<64x192xbf16>
    %cst_16 = arith.constant dense<0.000000e+00> : vector<18x192xf32>
    %14 = tpu.matmul %7, %13, %cst_16 {dimension_numbers = #tpu.dot_dimension_numbers<[1], [0], [0], [1], [0, 0, 1, 1], [], []>} : vector<18x64xbf16>, vector<64x192xbf16>, vector<18x192xf32> -> vector<18x192xf32>
    %15 = arith.addf %12, %14 : vector<18x192xf32>
    %c0_17 = arith.constant 0 : index
    %c0_18 = arith.constant 0 : index
    %16 = vector.load %arg8[%c0_17, %c0_18] : memref<64x192xbf16, #tpu.memory_space<vmem>>, vector<64x192xbf16>
    %cst_19 = arith.constant dense<0.000000e+00> : vector<18x192xf32>
    %17 = tpu.matmul %10, %16, %cst_19 {dimension_numbers = #tpu.dot_dimension_numbers<[1], [0], [0], [1], [0, 0, 1, 1], [], []>} : vector<18x64xbf16>, vector<64x192xbf16>, vector<18x192xf32> -> vector<18x192xf32>
    %18 = arith.addf %15, %17 : vector<18x192xf32>
    %19 = tpu.iota {dimensions = array<i32: 0>} : vector<18x1xi32>
    %c18_i32 = arith.constant 18 : i32
    %c0_i32 = arith.constant 0 : i32
    %20 = arith.cmpi eq, %c18_i32, %c0_i32 : i32
    %c1_i32 = arith.constant 1 : i32
    %21 = arith.select %20, %c1_i32, %c18_i32 : i32
    %22 = vector.broadcast %21 : i32 to vector<18x1xi32>
    %23 = arith.remsi %19, %22 : vector<18x1xi32>
    %c0_i32_20 = arith.constant 0 : i32
    %24 = vector.broadcast %c0_i32_20 : i32 to vector<18x1xi32>
    %25 = arith.cmpi ne, %23, %24 : vector<18x1xi32>
    %c0_i32_21 = arith.constant 0 : i32
    %26 = vector.broadcast %c0_i32_21 : i32 to vector<18x1xi32>
    %27 = arith.cmpi slt, %23, %26 : vector<18x1xi32>
    %c0_i32_22 = arith.constant 0 : i32
    %28 = arith.cmpi slt, %21, %c0_i32_22 : i32
    %29 = vector.broadcast %28 : i1 to vector<18x1xi1>
    %30 = vector.broadcast %29 : vector<18x1xi1> to vector<18x1xi1>
    %31 = arith.xori %27, %30 : vector<18x1xi1>
    %32 = arith.andi %31, %25 : vector<18x1xi1>
    %33 = vector.broadcast %21 : i32 to vector<18x1xi32>
    %34 = arith.addi %23, %33 : vector<18x1xi32>
    %35 = arith.select %32, %34, %23 : vector<18x1xi1>, vector<18x1xi32>
    %c1_i32_23 = arith.constant 1 : i32
    %36 = vector.broadcast %c1_i32_23 : i32 to vector<18x1xi32>
    %37 = arith.cmpi sge, %35, %36 : vector<18x1xi32>
    %c16_i32 = arith.constant 16 : i32
    %38 = vector.broadcast %c16_i32 : i32 to vector<18x1xi32>
    %39 = arith.cmpi sle, %35, %38 : vector<18x1xi32>
    %40 = arith.andi %37, %39 : vector<18x1xi1>
    %c0_24 = arith.constant 0 : index
    %c0_25 = arith.constant 0 : index
    %41 = vector.load %arg11[%c0_24, %c0_25] : memref<1x192xf32, #tpu.memory_space<vmem>>, vector<1x192xf32>
    %cst_26 = arith.constant 0.000000e+00 : f32
    %42 = vector.shape_cast %40 : vector<18x1xi1> to vector<18x1xi1>
    %43 = vector.broadcast %42 : vector<18x1xi1> to vector<18x192xi1>
    %44 = vector.shape_cast %41 : vector<1x192xf32> to vector<1x192xf32>
    %45 = vector.broadcast %44 : vector<1x192xf32> to vector<18x192xf32>
    %46 = vector.broadcast %cst_26 : f32 to vector<18x192xf32>
    %47 = arith.select %43, %45, %46 : vector<18x192xi1>, vector<18x192xf32>
    %48 = arith.addf %18, %47 : vector<18x192xf32>
    %49 = arith.truncf %48 : vector<18x192xf32> to vector<18x192xbf16>
    %c0_27 = arith.constant 0 : index
    %c0_28 = arith.constant 0 : index
    %50 = vector.load %arg15[%c0_27, %c0_28] : memref<18x192xbf16, #tpu.memory_space<vmem>>, vector<18x192xbf16>
    tpu.vector_store %arg15[%c0_27, %c0_28], %49 {strides = array<i32>} : memref<18x192xbf16, #tpu.memory_space<vmem>>, vector<18x192xbf16>,
    %cst_29 = arith.constant 0.000000e+00 : f32
    %51 = vector.broadcast %cst_29 : f32 to vector<16x128xf32>
    %c0_30 = arith.constant 0 : index
    %c0_31 = arith.constant 0 : index
    %52 = vector.load %arg15[%c0_30, %c0_31] : memref<18x192xbf16, #tpu.memory_space<vmem>>, vector<16x192xbf16>
    %c0_32 = arith.constant 0 : index
    %c0_33 = arith.constant 0 : index
    %c0_34 = arith.constant 0 : index
    %53 = vector.load %arg9[%c0_32, %c0_33, %c0_34] : memref<3x192x128xbf16, #tpu.memory_space<vmem>>, vector<1x192x128xbf16>
    %54 = vector.shape_cast %53 : vector<1x192x128xbf16> to vector<192x128xbf16>
    %cst_35 = arith.constant dense<0.000000e+00> : vector<16x128xf32>
    %55 = tpu.matmul %52, %54, %cst_35 {dimension_numbers = #tpu.dot_dimension_numbers<[1], [0], [0], [1], [0, 0, 1, 1], [], []>} : vector<16x192xbf16>, vector<192x128xbf16>, vector<16x128xf32> -> vector<16x128xf32>
    %56 = arith.addf %51, %55 : vector<16x128xf32>
    %c1 = arith.constant 1 : index
    %c0_36 = arith.constant 0 : index
    %57 = vector.load %arg15[%c1, %c0_36] : memref<18x192xbf16, #tpu.memory_space<vmem>>, vector<16x192xbf16>
    %c1_37 = arith.constant 1 : index
    %c0_38 = arith.constant 0 : index
    %c0_39 = arith.constant 0 : index
    %58 = vector.load %arg9[%c1_37, %c0_38, %c0_39] : memref<3x192x128xbf16, #tpu.memory_space<vmem>>, vector<1x192x128xbf16>
    %59 = vector.shape_cast %58 : vector<1x192x128xbf16> to vector<192x128xbf16>
    %cst_40 = arith.constant dense<0.000000e+00> : vector<16x128xf32>
    %60 = tpu.matmul %57, %59, %cst_40 {dimension_numbers = #tpu.dot_dimension_numbers<[1], [0], [0], [1], [0, 0, 1, 1], [], []>} : vector<16x192xbf16>, vector<192x128xbf16>, vector<16x128xf32> -> vector<16x128xf32>
    %61 = arith.addf %56, %60 : vector<16x128xf32>
    %c2 = arith.constant 2 : index
    %c0_41 = arith.constant 0 : index
    %62 = vector.load %arg15[%c2, %c0_41] : memref<18x192xbf16, #tpu.memory_space<vmem>>, vector<16x192xbf16>
    %c2_42 = arith.constant 2 : index
    %c0_43 = arith.constant 0 : index
    %c0_44 = arith.constant 0 : index
    %63 = vector.load %arg9[%c2_42, %c0_43, %c0_44] : memref<3x192x128xbf16, #tpu.memory_space<vmem>>, vector<1x192x128xbf16>
    %64 = vector.shape_cast %63 : vector<1x192x128xbf16> to vector<192x128xbf16>
    %cst_45 = arith.constant dense<0.000000e+00> : vector<16x128xf32>
    %65 = tpu.matmul %62, %64, %cst_45 {dimension_numbers = #tpu.dot_dimension_numbers<[1], [0], [0], [1], [0, 0, 1, 1], [], []>} : vector<16x192xbf16>, vector<192x128xbf16>, vector<16x128xf32> -> vector<16x128xf32>
    %66 = arith.addf %61, %65 : vector<16x128xf32>
    %c0_46 = arith.constant 0 : index
    %c0_47 = arith.constant 0 : index
    %67 = vector.load %arg12[%c0_46, %c0_47] : memref<1x128xf32, #tpu.memory_space<vmem>>, vector<1x128xf32>
    %68 = vector.broadcast %67 : vector<1x128xf32> to vector<16x128xf32>
    %69 = arith.addf %66, %68 : vector<16x128xf32>
    %cst_48 = arith.constant 0.000000e+00 : f32
    %70 = vector.broadcast %cst_48 : f32 to vector<16x128xf32>
    %71 = arith.maximumf %69, %70 : vector<16x128xf32>
    %72 = tpu.iota {dimensions = array<i32: 0>} : vector<16x1xi32>
    %c18_i32_49 = arith.constant 18 : i32
    %c0_i32_50 = arith.constant 0 : i32
    %73 = arith.cmpi eq, %c18_i32_49, %c0_i32_50 : i32
    %c1_i32_51 = arith.constant 1 : i32
    %74 = arith.select %73, %c1_i32_51, %c18_i32_49 : i32
    %75 = vector.broadcast %74 : i32 to vector<16x1xi32>
    %76 = arith.remsi %72, %75 : vector<16x1xi32>
    %c0_i32_52 = arith.constant 0 : i32
    %77 = vector.broadcast %c0_i32_52 : i32 to vector<16x1xi32>
    %78 = arith.cmpi ne, %76, %77 : vector<16x1xi32>
    %c0_i32_53 = arith.constant 0 : i32
    %79 = vector.broadcast %c0_i32_53 : i32 to vector<16x1xi32>
    %80 = arith.cmpi slt, %76, %79 : vector<16x1xi32>
    %c0_i32_54 = arith.constant 0 : i32
    %81 = arith.cmpi slt, %74, %c0_i32_54 : i32
    %82 = vector.broadcast %81 : i1 to vector<16x1xi1>
    %83 = vector.broadcast %82 : vector<16x1xi1> to vector<16x1xi1>
    %84 = arith.xori %80, %83 : vector<16x1xi1>
    %85 = arith.andi %84, %78 : vector<16x1xi1>
    %86 = vector.broadcast %74 : i32 to vector<16x1xi32>
    %87 = arith.addi %76, %86 : vector<16x1xi32>
    %88 = arith.select %85, %87, %76 : vector<16x1xi1>, vector<16x1xi32>
    %c16_i32_55 = arith.constant 16 : i32
    %89 = vector.broadcast %c16_i32_55 : i32 to vector<16x1xi32>
    %90 = arith.cmpi slt, %88, %89 : vector<16x1xi32>
    %cst_56 = arith.constant 0.000000e+00 : f32
    %91 = vector.shape_cast %90 : vector<16x1xi1> to vector<16x1xi1>
    %92 = vector.broadcast %91 : vector<16x1xi1> to vector<16x128xi1>
    %93 = vector.broadcast %cst_56 : f32 to vector<16x128xf32>
    %94 = arith.select %92, %71, %93 : vector<16x128xi1>, vector<16x128xf32>
    %cst_57 = arith.constant 0.000000e+00 : bf16
    %95 = vector.broadcast %cst_57 : bf16 to vector<1x128xbf16>
    %c0_58 = arith.constant 0 : index
    %c0_59 = arith.constant 0 : index
    %96 = vector.load %arg16[%c0_58, %c0_59] : memref<18x128xbf16, #tpu.memory_space<vmem>>, vector<1x128xbf16>
    tpu.vector_store %arg16[%c0_58, %c0_59], %95 {strides = array<i32>} : memref<18x128xbf16, #tpu.memory_space<vmem>>, vector<1x128xbf16>,
    %c17 = arith.constant 17 : index
    %c0_60 = arith.constant 0 : index
    %97 = vector.load %arg16[%c17, %c0_60] : memref<18x128xbf16, #tpu.memory_space<vmem>>, vector<1x128xbf16>
    tpu.vector_store %arg16[%c17, %c0_60], %95 {strides = array<i32>} : memref<18x128xbf16, #tpu.memory_space<vmem>>, vector<1x128xbf16>,
    %98 = arith.truncf %94 : vector<16x128xf32> to vector<16x128xbf16>
    %c1_61 = arith.constant 1 : index
    %c0_62 = arith.constant 0 : index
    %99 = vector.load %arg16[%c1_61, %c0_62] : memref<18x128xbf16, #tpu.memory_space<vmem>>, vector<16x128xbf16>
    tpu.vector_store %arg16[%c1_61, %c0_62], %98 {strides = array<i32>} : memref<18x128xbf16, #tpu.memory_space<vmem>>, vector<16x128xbf16>,
    %cst_63 = arith.constant 0.000000e+00 : f32
    %100 = vector.broadcast %cst_63 : f32 to vector<16x128xf32>
    %c0_64 = arith.constant 0 : index
    %c0_65 = arith.constant 0 : index
    %101 = vector.load %arg16[%c0_64, %c0_65] : memref<18x128xbf16, #tpu.memory_space<vmem>>, vector<16x128xbf16>
    %c0_66 = arith.constant 0 : index
    %c0_67 = arith.constant 0 : index
    %c0_68 = arith.constant 0 : index
    %102 = vector.load %arg10[%c0_66, %c0_67, %c0_68] : memref<3x128x128xbf16, #tpu.memory_space<vmem>>, vector<1x128x128xbf16>
    %103 = vector.shape_cast %102 : vector<1x128x128xbf16> to vector<128x128xbf16>
    %cst_69 = arith.constant dense<0.000000e+00> : vector<16x128xf32>
    %104 = tpu.matmul %101, %103, %cst_69 {dimension_numbers = #tpu.dot_dimension_numbers<[1], [0], [0], [1], [0, 0, 1, 1], [], []>} : vector<16x128xbf16>, vector<128x128xbf16>, vector<16x128xf32> -> vector<16x128xf32>
    %105 = arith.addf %100, %104 : vector<16x128xf32>
    %c1_70 = arith.constant 1 : index
    %c0_71 = arith.constant 0 : index
    %106 = vector.load %arg16[%c1_70, %c0_71] : memref<18x128xbf16, #tpu.memory_space<vmem>>, vector<16x128xbf16>
    %c1_72 = arith.constant 1 : index
    %c0_73 = arith.constant 0 : index
    %c0_74 = arith.constant 0 : index
    %107 = vector.load %arg10[%c1_72, %c0_73, %c0_74] : memref<3x128x128xbf16, #tpu.memory_space<vmem>>, vector<1x128x128xbf16>
    %108 = vector.shape_cast %107 : vector<1x128x128xbf16> to vector<128x128xbf16>
    %cst_75 = arith.constant dense<0.000000e+00> : vector<16x128xf32>
    %109 = tpu.matmul %106, %108, %cst_75 {dimension_numbers = #tpu.dot_dimension_numbers<[1], [0], [0], [1], [0, 0, 1, 1], [], []>} : vector<16x128xbf16>, vector<128x128xbf16>, vector<16x128xf32> -> vector<16x128xf32>
    %110 = arith.addf %105, %109 : vector<16x128xf32>
    %c2_76 = arith.constant 2 : index
    %c0_77 = arith.constant 0 : index
    %111 = vector.load %arg16[%c2_76, %c0_77] : memref<18x128xbf16, #tpu.memory_space<vmem>>, vector<16x128xbf16>
    %c2_78 = arith.constant 2 : index
    %c0_79 = arith.constant 0 : index
    %c0_80 = arith.constant 0 : index
    %112 = vector.load %arg10[%c2_78, %c0_79, %c0_80] : memref<3x128x128xbf16, #tpu.memory_space<vmem>>, vector<1x128x128xbf16>
    %113 = vector.shape_cast %112 : vector<1x128x128xbf16> to vector<128x128xbf16>
    %cst_81 = arith.constant dense<0.000000e+00> : vector<16x128xf32>
    %114 = tpu.matmul %111, %113, %cst_81 {dimension_numbers = #tpu.dot_dimension_numbers<[1], [0], [0], [1], [0, 0, 1, 1], [], []>} : vector<16x128xbf16>, vector<128x128xbf16>, vector<16x128xf32> -> vector<16x128xf32>
    %115 = arith.addf %110, %114 : vector<16x128xf32>
    %c0_82 = arith.constant 0 : index
    %c0_83 = arith.constant 0 : index
    %116 = vector.load %arg13[%c0_82, %c0_83] : memref<1x128xf32, #tpu.memory_space<vmem>>, vector<1x128xf32>
    %117 = vector.broadcast %116 : vector<1x128xf32> to vector<16x128xf32>
    %118 = arith.addf %115, %117 : vector<16x128xf32>
    %cst_84 = arith.constant 0.000000e+00 : f32
    %119 = vector.broadcast %cst_84 : f32 to vector<16x128xf32>
    %120 = arith.maximumf %118, %119 : vector<16x128xf32>
    %c0_85 = arith.constant 0 : index
    %c0_86 = arith.constant 0 : index
    %121 = vector.load %arg14[%c0_85, %c0_86] : memref<16x128xf32, #tpu.memory_space<vmem>>, vector<16x128xf32>
    tpu.vector_store %arg14[%c0_85, %c0_86], %120 {strides = array<i32>} : memref<16x128xf32, #tpu.memory_space<vmem>>, vector<16x128xf32>,
    return
  }
  func.func @transform_0(%arg0: i32) -> (i32, i32) {
    %c0_i32 = arith.constant 0 : i32
    %c0_i32_0 = arith.constant 0 : i32
    return %arg0, %c0_i32 : i32, i32
  }
  func.func @transform_1(%arg0: i32) -> (i32, i32) {
    %c0_i32 = arith.constant 0 : i32
    %c0_i32_0 = arith.constant 0 : i32
    return %arg0, %c0_i32 : i32, i32
  }
  func.func @transform_2(%arg0: i32) -> (i32, i32) {
    %c0_i32 = arith.constant 0 : i32
    %c0_i32_0 = arith.constant 0 : i32
    %c0_i32_1 = arith.constant 0 : i32
    return %c0_i32, %c0_i32_0 : i32, i32
  }
  func.func @transform_3(%arg0: i32) -> (i32, i32) {
    %c0_i32 = arith.constant 0 : i32
    %c0_i32_0 = arith.constant 0 : i32
    %c0_i32_1 = arith.constant 0 : i32
    return %c0_i32, %c0_i32_0 : i32, i32
  }
  func.func @transform_4(%arg0: i32) -> (i32, i32) {
    %c0_i32 = arith.constant 0 : i32
    %c0_i32_0 = arith.constant 0 : i32
    %c0_i32_1 = arith.constant 0 : i32
    return %c0_i32, %c0_i32_0 : i32, i32
  }
  func.func @transform_5(%arg0: i32) -> (i32, i32) {
    %c0_i32 = arith.constant 0 : i32
    %c0_i32_0 = arith.constant 0 : i32
    %c0_i32_1 = arith.constant 0 : i32
    return %c0_i32, %c0_i32_0 : i32, i32
  }
  func.func @transform_6(%arg0: i32) -> (i32, i32) {
    %c0_i32 = arith.constant 0 : i32
    %c0_i32_0 = arith.constant 0 : i32
    %c0_i32_1 = arith.constant 0 : i32
    return %c0_i32, %c0_i32_0 : i32, i32
  }
  func.func @transform_7(%arg0: i32) -> (i32, i32) {
    %c0_i32 = arith.constant 0 : i32
    %c0_i32_0 = arith.constant 0 : i32
    %c0_i32_1 = arith.constant 0 : i32
    return %c0_i32, %c0_i32_0 : i32, i32
  }
  func.func @transform_8(%arg0: i32) -> (i32, i32, i32) {
    %c0_i32 = arith.constant 0 : i32
    %c0_i32_0 = arith.constant 0 : i32
    %c0_i32_1 = arith.constant 0 : i32
    %c0_i32_2 = arith.constant 0 : i32
    return %c0_i32, %c0_i32_0, %c0_i32_1 : i32, i32, i32
  }
  func.func @transform_9(%arg0: i32) -> (i32, i32, i32) {
    %c0_i32 = arith.constant 0 : i32
    %c0_i32_0 = arith.constant 0 : i32
    %c0_i32_1 = arith.constant 0 : i32
    %c0_i32_2 = arith.constant 0 : i32
    return %c0_i32, %c0_i32_0, %c0_i32_1 : i32, i32, i32
  }
  func.func @transform_10(%arg0: i32) -> (i32, i32) {
    %c0_i32 = arith.constant 0 : i32
    %c0_i32_0 = arith.constant 0 : i32
    %c0_i32_1 = arith.constant 0 : i32
    return %c0_i32, %c0_i32_0 : i32, i32
  }
  func.func @transform_11(%arg0: i32) -> (i32, i32) {
    %c0_i32 = arith.constant 0 : i32
    %c0_i32_0 = arith.constant 0 : i32
    %c0_i32_1 = arith.constant 0 : i32
    return %c0_i32, %c0_i32_0 : i32, i32
  }
  func.func @transform_12(%arg0: i32) -> (i32, i32) {
    %c0_i32 = arith.constant 0 : i32
    %c0_i32_0 = arith.constant 0 : i32
    %c0_i32_1 = arith.constant 0 : i32
    return %c0_i32, %c0_i32_0 : i32, i32
  }
  func.func @transform_13(%arg0: i32) -> (i32, i32) {
    %c0_i32 = arith.constant 0 : i32
    %c0_i32_0 = arith.constant 0 : i32
    return %arg0, %c0_i32 : i32, i32
  }
}

</mosaic_0001>

<llo_original>
// kernel: _lambda_.1
$region0: #{_lambda_.1}
  #allocation0 [shape = 'u32[]', space=smem, size = 0x4, offset = 0x4, fixed_abs, tag = 'smem constant byte address 0x4 - core index']
  #allocation1 [shape = 'u32[144,128]{1,0:T(1,128)}', space=vmem, size = 0x12000, scoped, tag = 'internal scratch']
  #allocation2 [shape = 'bf16[18,192]{1,0:T(8,128)(2,1)}', space=vmem, size = 0x3000, scoped, tag = 'scratch operand']
  #allocation3 [shape = 'bf16[18,128]{1,0:T(8,128)(2,1)}', space=vmem, size = 0x1800, scoped, tag = 'scratch operand']
  %s0 = inlined_call_operand.vmem [shape: bf16[32,128], index: 0, kind: input, shape index: {}]
  %s1 = inlined_call_operand.vmem [shape: bf16[16,64], index: 1, kind: input, shape index: {}]
  %s2 = inlined_call_operand.vmem [shape: bf16[18,16], index: 2, kind: input, shape index: {}]
  %s3 = inlined_call_operand.vmem [shape: bf16[18,8], index: 3, kind: input, shape index: {}]
  %s4 = inlined_call_operand.vmem [shape: bf16[18,8], index: 4, kind: input, shape index: {}]
  %s5 = inlined_call_operand.vmem [shape: bf16[128,192], index: 5, kind: input, shape index: {}]
  %s6 = inlined_call_operand.vmem [shape: bf16[64,192], index: 6, kind: input, shape index: {}]
  %s7 = inlined_call_operand.vmem [shape: bf16[64,192], index: 7, kind: input, shape index: {}]
  %s8 = inlined_call_operand.vmem [shape: bf16[3,192,128], index: 8, kind: input, shape index: {}]
  %s9 = inlined_call_operand.vmem [shape: bf16[3,128,128], index: 9, kind: input, shape index: {}]
  %s10 = inlined_call_operand.vmem [shape: f32[1,192], index: 10, kind: input, shape index: {}]
  %s11 = inlined_call_operand.vmem [shape: f32[1,128], index: 11, kind: input, shape index: {}]
  %s12 = inlined_call_operand.vmem [shape: f32[1,128], index: 12, kind: input, shape index: {}]
  %s13 = inlined_call_operand.vmem [shape: f32[32,128], index: 13, kind: output, shape index: {}]
  %s14 = sld [smem:[#allocation0]]
  $region85: #{_lambda_.1} parent=0
    _
  %s16 = ssub.s32 1, %s14
  %s17 = scalar_select 0, %s16, %s14
  loop: start=0, step=1, limit=4
  $region2: #{_lambda_.1} parent=0 // loop_pre_header
    _
  $region3: #{_lambda_.1} parent=0 // loop_header
    %s19 = sphi 0, %s23
    %p20 = scmp.ge.s32.totalorder %s19, 4
    %s29 = sphi 0, %s31
    %s32 = sphi 0, %s29
    %s33 = sphi 0, %s32
    %s49 = sphi 0, %s33
    %s55 = sphi 0, %s57
    %s58 = sphi 0, %s55
    %s59 = sphi 0, %s58
    %s75 = sphi 0, %s59
    %s79 = sphi 0, %s79
    %s81 = sphi 0, %s79
    %s82 = sphi 0, %s81
    %s96 = sphi 0, %s82
    %s100 = sphi 0, %s100
    %s102 = sphi 0, %s100
    %s103 = sphi 0, %s102
    %s117 = sphi 0, %s103
    %s121 = sphi 0, %s121
    %s123 = sphi 0, %s121
    %s124 = sphi 0, %s123
    %s138 = sphi 0, %s124
    %s142 = sphi 0, %s142
    %s144 = sphi 0, %s142
    %s145 = sphi 0, %s144
    %s159 = sphi 0, %s145
    %s163 = sphi 0, %s163
    %s165 = sphi 0, %s163
    %s166 = sphi 0, %s165
    %s180 = sphi 0, %s166
    %s184 = sphi 0, %s184
    %s186 = sphi 0, %s184
    %s187 = sphi 0, %s186
    %s201 = sphi 0, %s187
    %s205 = sphi 0, %s205
    %s207 = sphi 0, %s205
    %s208 = sphi 0, %s207
    %s222 = sphi 0, %s208
    %s226 = sphi 0, %s226
    %s228 = sphi 0, %s226
    %s229 = sphi 0, %s228
    %s243 = sphi 0, %s229
    %s247 = sphi 0, %s247
    %s249 = sphi 0, %s247
    %s250 = sphi 0, %s249
    %s264 = sphi 0, %s250
    %s268 = sphi 0, %s268
    %s270 = sphi 0, %s268
    %s271 = sphi 0, %s270
    %s285 = sphi 0, %s271
    %s289 = sphi 0, %s289
    %s291 = sphi 0, %s289
    %s292 = sphi 0, %s291
    %s306 = sphi 0, %s292
    %s312 = sphi 0, %s314
    %s315 = sphi 0, %s312
    %s316 = sphi 0, %s315
    %s332 = sphi 0, %s316
  $region4: #{_lambda_.1} parent=0 // loop_header_branch
    %22 = sbr.rel (%p20) target = $region8
  $region5: #{_lambda_.1} parent=0 // loop_body
    %s24 = ssub.s32 %s19, 1
    %s25 = ssub.s32 %s19, 2
    %s26 = sadd.s32 %s19, 1
    %s27 = ssub.s32 %s19, %s26
    %p28 = scmp.eq.s32.totalorder %s27, 0
    %s30 = sadd.s32 %s29, 1
    %s31 = scalar_select %p28, %s29, %s30
    %p34 = pneg %p28
    %p35 = scmp.eq.s32.totalorder %s19, 1
    %p36 = por %p34, %p35
    %p37 = scmp.ne.s32.totalorder %s29, %s32
    %p38 = scmp.eq.s32.totalorder %s19, 0
    %p39 = por %p37, %p38
    %p40 = scmp.ne.s32.totalorder %s29, %s32
    %p41 = scmp.eq.s32.totalorder %s24, 1
    %p42 = por %p40, %p41
    %p43 = scmp.ne.s32.totalorder %s32, %s33
    %p44 = scmp.eq.s32.totalorder %s24, 0
    %p45 = por %p43, %p44
    %p46 = scmp.ne.s32.totalorder %s32, %s33
    %p47 = scmp.eq.s32.totalorder %s25, 1
    %p48 = por %p46, %p47
    %p50 = scmp.ne.s32.totalorder %s33, %s49
    %p51 = scmp.eq.s32.totalorder %s25, 0
    %p52 = por %p50, %p51
    %s53 = ssub.s32 %s19, %s26
    %p54 = scmp.eq.s32.totalorder %s53, 0
    %s56 = sadd.s32 %s55, 1
    %s57 = scalar_select %p54, %s55, %s56
    %p60 = pneg %p54
    %p61 = scmp.eq.s32.totalorder %s19, 1
    %p62 = por %p60, %p61
    %p63 = scmp.ne.s32.totalorder %s55, %s58
    %p64 = scmp.eq.s32.totalorder %s19, 0
    %p65 = por %p63, %p64
    %p66 = scmp.ne.s32.totalorder %s55, %s58
    %p67 = scmp.eq.s32.totalorder %s24, 1
    %p68 = por %p66, %p67
    %p69 = scmp.ne.s32.totalorder %s58, %s59
    %p70 = scmp.eq.s32.totalorder %s24, 0
    %p71 = por %p69, %p70
    %p72 = scmp.ne.s32.totalorder %s58, %s59
    %p73 = scmp.eq.s32.totalorder %s25, 1
    %p74 = por %p72, %p73
    %p76 = scmp.ne.s32.totalorder %s59, %s75
    %p77 = scmp.eq.s32.totalorder %s25, 0
    %p78 = por %p76, %p77
    %s80 = sadd.s32 %s79, 1
    %p83 = scmp.eq.s32.totalorder %s19, 1
    %p84 = scmp.ne.s32.totalorder %s79, %s81
    %p85 = scmp.eq.s32.totalorder %s19, 0
    %p86 = por %p84, %p85
    %p87 = scmp.ne.s32.totalorder %s79, %s81
    %p88 = scmp.eq.s32.totalorder %s24, 1
    %p89 = por %p87, %p88
    %p90 = scmp.ne.s32.totalorder %s81, %s82
    %p91 = scmp.eq.s32.totalorder %s24, 0
    %p92 = por %p90, %p91
    %p93 = scmp.ne.s32.totalorder %s81, %s82
    %p94 = scmp.eq.s32.totalorder %s25, 1
    %p95 = por %p93, %p94
    %p97 = scmp.ne.s32.totalorder %s82, %s96
    %p98 = scmp.eq.s32.totalorder %s25, 0
    %p99 = por %p97, %p98
    %s101 = sadd.s32 %s100, 1
    %p104 = scmp.eq.s32.totalorder %s19, 1
    %p105 = scmp.ne.s32.totalorder %s100, %s102
    %p106 = scmp.eq.s32.totalorder %s19, 0
    %p107 = por %p105, %p106
    %p108 = scmp.ne.s32.totalorder %s100, %s102
    %p109 = scmp.eq.s32.totalorder %s24, 1
    %p110 = por %p108, %p109
    %p111 = scmp.ne.s32.totalorder %s102, %s103
    %p112 = scmp.eq.s32.totalorder %s24, 0
    %p113 = por %p111, %p112
    %p114 = scmp.ne.s32.totalorder %s102, %s103
    %p115 = scmp.eq.s32.totalorder %s25, 1
    %p116 = por %p114, %p115
    %p118 = scmp.ne.s32.totalorder %s103, %s117
    %p119 = scmp.eq.s32.totalorder %s25, 0
    %p120 = por %p118, %p119
    %s122 = sadd.s32 %s121, 1
    %p125 = scmp.eq.s32.totalorder %s19, 1
    %p126 = scmp.ne.s32.totalorder %s121, %s123
    %p127 = scmp.eq.s32.totalorder %s19, 0
    %p128 = por %p126, %p127
    %p129 = scmp.ne.s32.totalorder %s121, %s123
    %p130 = scmp.eq.s32.totalorder %s24, 1
    %p131 = por %p129, %p130
    %p132 = scmp.ne.s32.totalorder %s123, %s124
    %p133 = scmp.eq.s32.totalorder %s24, 0
    %p134 = por %p132, %p133
    %p135 = scmp.ne.s32.totalorder %s123, %s124
    %p136 = scmp.eq.s32.totalorder %s25, 1
    %p137 = por %p135, %p136
    %p139 = scmp.ne.s32.totalorder %s124, %s138
    %p140 = scmp.eq.s32.totalorder %s25, 0
    %p141 = por %p139, %p140
    %s143 = sadd.s32 %s142, 1
    %p146 = scmp.eq.s32.totalorder %s19, 1
    %p147 = scmp.ne.s32.totalorder %s142, %s144
    %p148 = scmp.eq.s32.totalorder %s19, 0
    %p149 = por %p147, %p148
    %p150 = scmp.ne.s32.totalorder %s142, %s144
    %p151 = scmp.eq.s32.totalorder %s24, 1
    %p152 = por %p150, %p151
    %p153 = scmp.ne.s32.totalorder %s144, %s145
    %p154 = scmp.eq.s32.totalorder %s24, 0
    %p155 = por %p153, %p154
    %p156 = scmp.ne.s32.totalorder %s144, %s145
    %p157 = scmp.eq.s32.totalorder %s25, 1
    %p158 = por %p156, %p157
    %p160 = scmp.ne.s32.totalorder %s145, %s159
    %p161 = scmp.eq.s32.totalorder %s25, 0
    %p162 = por %p160, %p161
    %s164 = sadd.s32 %s163, 1
    %p167 = scmp.eq.s32.totalorder %s19, 1
    %p168 = scmp.ne.s32.totalorder %s163, %s165
    %p169 = scmp.eq.s32.totalorder %s19, 0
    %p170 = por %p168, %p169
    %p171 = scmp.ne.s32.totalorder %s163, %s165
    %p172 = scmp.eq.s32.totalorder %s24, 1
    %p173 = por %p171, %p172
    %p174 = scmp.ne.s32.totalorder %s165, %s166
    %p175 = scmp.eq.s32.totalorder %s24, 0
    %p176 = por %p174, %p175
    %p177 = scmp.ne.s32.totalorder %s165, %s166
    %p178 = scmp.eq.s32.totalorder %s25, 1
    %p179 = por %p177, %p178
    %p181 = scmp.ne.s32.totalorder %s166, %s180
    %p182 = scmp.eq.s32.totalorder %s25, 0
    %p183 = por %p181, %p182
    %s185 = sadd.s32 %s184, 1
    %p188 = scmp.eq.s32.totalorder %s19, 1
    %p189 = scmp.ne.s32.totalorder %s184, %s186
    %p190 = scmp.eq.s32.totalorder %s19, 0
    %p191 = por %p189, %p190
    %p192 = scmp.ne.s32.totalorder %s184, %s186
    %p193 = scmp.eq.s32.totalorder %s24, 1
    %p194 = por %p192, %p193
    %p195 = scmp.ne.s32.totalorder %s186, %s187
    %p196 = scmp.eq.s32.totalorder %s24, 0
    %p197 = por %p195, %p196
    %p198 = scmp.ne.s32.totalorder %s186, %s187
    %p199 = scmp.eq.s32.totalorder %s25, 1
    %p200 = por %p198, %p199
    %p202 = scmp.ne.s32.totalorder %s187, %s201
    %p203 = scmp.eq.s32.totalorder %s25, 0
    %p204 = por %p202, %p203
    %s206 = sadd.s32 %s205, 1
    %p209 = scmp.eq.s32.totalorder %s19, 1
    %p210 = scmp.ne.s32.totalorder %s205, %s207
    %p211 = scmp.eq.s32.totalorder %s19, 0
    %p212 = por %p210, %p211
    %p213 = scmp.ne.s32.totalorder %s205, %s207
    %p214 = scmp.eq.s32.totalorder %s24, 1
    %p215 = por %p213, %p214
    %p216 = scmp.ne.s32.totalorder %s207, %s208
    %p217 = scmp.eq.s32.totalorder %s24, 0
    %p218 = por %p216, %p217
    %p219 = scmp.ne.s32.totalorder %s207, %s208
    %p220 = scmp.eq.s32.totalorder %s25, 1
    %p221 = por %p219, %p220
    %p223 = scmp.ne.s32.totalorder %s208, %s222
    %p224 = scmp.eq.s32.totalorder %s25, 0
    %p225 = por %p223, %p224
    %s227 = sadd.s32 %s226, 1
    %p230 = scmp.eq.s32.totalorder %s19, 1
    %p231 = scmp.ne.s32.totalorder %s226, %s228
    %p232 = scmp.eq.s32.totalorder %s19, 0
    %p233 = por %p231, %p232
    %p234 = scmp.ne.s32.totalorder %s226, %s228
    %p235 = scmp.eq.s32.totalorder %s24, 1
    %p236 = por %p234, %p235
    %p237 = scmp.ne.s32.totalorder %s228, %s229
    %p238 = scmp.eq.s32.totalorder %s24, 0
    %p239 = por %p237, %p238
    %p240 = scmp.ne.s32.totalorder %s228, %s229
    %p241 = scmp.eq.s32.totalorder %s25, 1
    %p242 = por %p240, %p241
    %p244 = scmp.ne.s32.totalorder %s229, %s243
    %p245 = scmp.eq.s32.totalorder %s25, 0
    %p246 = por %p244, %p245
    %s248 = sadd.s32 %s247, 1
    %p251 = scmp.eq.s32.totalorder %s19, 1
    %p252 = scmp.ne.s32.totalorder %s247, %s249
    %p253 = scmp.eq.s32.totalorder %s19, 0
    %p254 = por %p252, %p253
    %p255 = scmp.ne.s32.totalorder %s247, %s249
    %p256 = scmp.eq.s32.totalorder %s24, 1
    %p257 = por %p255, %p256
    %p258 = scmp.ne.s32.totalorder %s249, %s250
    %p259 = scmp.eq.s32.totalorder %s24, 0
    %p260 = por %p258, %p259
    %p261 = scmp.ne.s32.totalorder %s249, %s250
    %p262 = scmp.eq.s32.totalorder %s25, 1
    %p263 = por %p261, %p262
    %p265 = scmp.ne.s32.totalorder %s250, %s264
    %p266 = scmp.eq.s32.totalorder %s25, 0
    %p267 = por %p265, %p266
    %s269 = sadd.s32 %s268, 1
    %p272 = scmp.eq.s32.totalorder %s19, 1
    %p273 = scmp.ne.s32.totalorder %s268, %s270
    %p274 = scmp.eq.s32.totalorder %s19, 0
    %p275 = por %p273, %p274
    %p276 = scmp.ne.s32.totalorder %s268, %s270
    %p277 = scmp.eq.s32.totalorder %s24, 1
    %p278 = por %p276, %p277
    %p279 = scmp.ne.s32.totalorder %s270, %s271
    %p280 = scmp.eq.s32.totalorder %s24, 0
    %p281 = por %p279, %p280
    %p282 = scmp.ne.s32.totalorder %s270, %s271
    %p283 = scmp.eq.s32.totalorder %s25, 1
    %p284 = por %p282, %p283
    %p286 = scmp.ne.s32.totalorder %s271, %s285
    %p287 = scmp.eq.s32.totalorder %s25, 0
    %p288 = por %p286, %p287
    %s290 = sadd.s32 %s289, 1
    %p293 = scmp.eq.s32.totalorder %s19, 1
    %p294 = scmp.ne.s32.totalorder %s289, %s291
    %p295 = scmp.eq.s32.totalorder %s19, 0
    %p296 = por %p294, %p295
    %p297 = scmp.ne.s32.totalorder %s289, %s291
    %p298 = scmp.eq.s32.totalorder %s24, 1
    %p299 = por %p297, %p298
    %p300 = scmp.ne.s32.totalorder %s291, %s292
    %p301 = scmp.eq.s32.totalorder %s24, 0
    %p302 = por %p300, %p301
    %p303 = scmp.ne.s32.totalorder %s291, %s292
    %p304 = scmp.eq.s32.totalorder %s25, 1
    %p305 = por %p303, %p304
    %p307 = scmp.ne.s32.totalorder %s292, %s306
    %p308 = scmp.eq.s32.totalorder %s25, 0
    %p309 = por %p307, %p308
    %s310 = ssub.s32 %s19, %s26
    %p311 = scmp.eq.s32.totalorder %s310, 0
    %s313 = sadd.s32 %s312, 1
    %s314 = scalar_select %p311, %s312, %s313
    %p317 = pneg %p311
    %p318 = scmp.eq.s32.totalorder %s19, 1
    %p319 = por %p317, %p318
    %p320 = scmp.ne.s32.totalorder %s312, %s315
    %p321 = scmp.eq.s32.totalorder %s19, 0
    %p322 = por %p320, %p321
    %p323 = scmp.ne.s32.totalorder %s312, %s315
    %p324 = scmp.eq.s32.totalorder %s24, 1
    %p325 = por %p323, %p324
    %p326 = scmp.ne.s32.totalorder %s315, %s316
    %p327 = scmp.eq.s32.totalorder %s24, 0
    %p328 = por %p326, %p327
    %p329 = scmp.ne.s32.totalorder %s315, %s316
    %p330 = scmp.eq.s32.totalorder %s25, 1
    %p331 = por %p329, %p330
    %p333 = scmp.ne.s32.totalorder %s316, %s332
    %p334 = scmp.eq.s32.totalorder %s25, 0
    %p335 = por %p333, %p334
    %p336 = scmp.le.s32.totalorder 1, %s19
    %p337 = scmp.lt.s32.totalorder %s19, 3
    %p338 = pnand %p336, %p337
    %p339 = pneg %p338
    // Predicated region
    $region9: #{_lambda_.1} parent=5 // pred_check
      _
    $region10: #{_lambda_.1} parent=5 // pred_check_branch
      %341 = sbr.rel (%p338) target = $region12
    $region11: #{_lambda_.1} parent=5 // pred_region
      %s342 = ssub.s32 %s19, 1
      // Predicated region
      $region13: #{_lambda_.1} parent=11 // pred_check
        %p343 = pneg %p92
      $region14: #{_lambda_.1} parent=11 // pred_check_branch
        %345 = sbr.rel (%p343) target = $region16
      $region15: #{_lambda_.1} parent=11 // pred_region
        _
      $region16: #{_lambda_.1} parent=11 // pred_fallthru
        _
      // Predicated region
      $region17: #{_lambda_.1} parent=11 // pred_check
        %p346 = pneg %p113
      $region18: #{_lambda_.1} parent=11 // pred_check_branch
        %348 = sbr.rel (%p346) target = $region20
      $region19: #{_lambda_.1} parent=11 // pred_region
        _
      $region20: #{_lambda_.1} parent=11 // pred_fallthru
        _
      // Predicated region
      $region21: #{_lambda_.1} parent=11 // pred_check
        %p349 = pneg %p134
      $region22: #{_lambda_.1} parent=11 // pred_check_branch
        %351 = sbr.rel (%p349) target = $region24
      $region23: #{_lambda_.1} parent=11 // pred_region
        _
      $region24: #{_lambda_.1} parent=11 // pred_fallthru
        _
      // Predicated region
      $region25: #{_lambda_.1} parent=11 // pred_check
        %p352 = pneg %p155
      $region26: #{_lambda_.1} parent=11 // pred_check_branch
        %354 = sbr.rel (%p352) target = $region28
      $region27: #{_lambda_.1} parent=11 // pred_region
        _
      $region28: #{_lambda_.1} parent=11 // pred_fallthru
        _
      // Predicated region
      $region29: #{_lambda_.1} parent=11 // pred_check
        %p355 = pneg %p176
      $region30: #{_lambda_.1} parent=11 // pred_check_branch
        %357 = sbr.rel (%p355) target = $region32
      $region31: #{_lambda_.1} parent=11 // pred_region
        _
      $region32: #{_lambda_.1} parent=11 // pred_fallthru
        _
      // Predicated region
      $region33: #{_lambda_.1} parent=11 // pred_check
        %p358 = pneg %p197
      $region34: #{_lambda_.1} parent=11 // pred_check_branch
        %360 = sbr.rel (%p358) target = $region36
      $region35: #{_lambda_.1} parent=11 // pred_region
        _
      $region36: #{_lambda_.1} parent=11 // pred_fallthru
        _
      // Predicated region
      $region37: #{_lambda_.1} parent=11 // pred_check
        %p361 = pneg %p218
      $region38: #{_lambda_.1} parent=11 // pred_check_branch
        %363 = sbr.rel (%p361) target = $region40
      $region39: #{_lambda_.1} parent=11 // pred_region
        _
      $region40: #{_lambda_.1} parent=11 // pred_fallthru
        _
      // Predicated region
      $region41: #{_lambda_.1} parent=11 // pred_check
        %p364 = pneg %p239
      $region42: #{_lambda_.1} parent=11 // pred_check_branch
        %366 = sbr.rel (%p364) target = $region44
      $region43: #{_lambda_.1} parent=11 // pred_region
        _
      $region44: #{_lambda_.1} parent=11 // pred_fallthru
        _
      // Predicated region
      $region45: #{_lambda_.1} parent=11 // pred_check
        %p367 = pneg %p260
      $region46: #{_lambda_.1} parent=11 // pred_check_branch
        %369 = sbr.rel (%p367) target = $region48
      $region47: #{_lambda_.1} parent=11 // pred_region
        _
      $region48: #{_lambda_.1} parent=11 // pred_fallthru
        _
      // Predicated region
      $region49: #{_lambda_.1} parent=11 // pred_check
        %p370 = pneg %p281
      $region50: #{_lambda_.1} parent=11 // pred_check_branch
        %372 = sbr.rel (%p370) target = $region52
      $region51: #{_lambda_.1} parent=11 // pred_region
        _
      $region52: #{_lambda_.1} parent=11 // pred_fallthru
        _
      // Predicated region
      $region53: #{_lambda_.1} parent=11 // pred_check
        %p373 = pneg %p302
      $region54: #{_lambda_.1} parent=11 // pred_check_branch
        %375 = sbr.rel (%p373) target = $region56
      $region55: #{_lambda_.1} parent=11 // pred_region
        _
      $region56: #{_lambda_.1} parent=11 // pred_fallthru
        _
    $region12: #{_lambda_.1} parent=5 // pred_fallthru
      _
    %p376 = scmp.lt.s32.totalorder %s19, 2
    // Predicated region
    $region57: #{_lambda_.1} parent=5 // pred_check
      %p377 = pneg %p376
    $region58: #{_lambda_.1} parent=5 // pred_check_branch
      %379 = sbr.rel (%p377) target = $region60
    $region59: #{_lambda_.1} parent=5 // pred_region
      // Predicated region
      $region61: #{_lambda_.1} parent=59 // pred_check
        %p380 = pneg %p39
      $region62: #{_lambda_.1} parent=59 // pred_check_branch
        %382 = sbr.rel (%p380) target = $region64
      $region63: #{_lambda_.1} parent=59 // pred_region
        %s383 = smul.u32 2, %s19
        %p384 = scmp.lt.s32.totalorder %s383, 3
        %s385 = scalar_select %p384, %s383, 3
        %s386 = smul.addr %s385, 4
        %s387 = scalar_lea.vmem %s0, %s386
        %s388 = smul.u32 2, %s19
      $region64: #{_lambda_.1} parent=59 // pred_fallthru
        _
      // Predicated region
      $region65: #{_lambda_.1} parent=59 // pred_check
        %p389 = pneg %p65
      $region66: #{_lambda_.1} parent=59 // pred_check_branch
        %391 = sbr.rel (%p389) target = $region68
      $region67: #{_lambda_.1} parent=59 // pred_region
        %p392 = scmp.lt.s32.totalorder %s19, 1
        %s393 = scalar_select %p392, %s19, 1
        %s394 = smul.addr %s393, 4
        %s395 = scalar_lea.vmem %s1, %s394
      $region68: #{_lambda_.1} parent=59 // pred_fallthru
        _
    $region60: #{_lambda_.1} parent=5 // pred_fallthru
      _
    %p396 = scmp.le.s32.totalorder 1, %s19
    %p397 = scmp.lt.s32.totalorder %s19, 3
    %p398 = pnand %p396, %p397
    %p399 = pneg %p398
    // Predicated region
    $region69: #{_lambda_.1} parent=5 // pred_check
      _
    $region70: #{_lambda_.1} parent=5 // pred_check_branch
      %401 = sbr.rel (%p398) target = $region72
    $region71: #{_lambda_.1} parent=5 // pred_region
      %s402 = ssub.s32 %s19, 1
      %s403 = smul.u32 2, %s24
      %p404 = scmp.lt.s32.totalorder %s403, 3
      %s405 = scalar_select %p404, %s403, 3
      %s406 = smul.addr %s405, 4
      %s407 = scalar_lea.vmem %s0, %s406
      %p408 = pneg %p45
      %p409 = pneg %p42
      %p410 = scmp.lt.s32.totalorder %s24, 1
      %s411 = scalar_select %p410, %s24, 1
      %s412 = smul.addr %s411, 4
      %s413 = scalar_lea.vmem %s1, %s412
      %p414 = pneg %p71
      %p415 = pneg %p68
      %p416 = pneg %p92
      %p417 = pneg %p89
      %p418 = pneg %p113
      %p419 = pneg %p110
      %p420 = pneg %p134
      %p421 = pneg %p131
      %p422 = pneg %p155
      %p423 = pneg %p152
      %p424 = pneg %p176
      %p425 = pneg %p173
      %p426 = pneg %p197
      %p427 = pneg %p194
      %p428 = pneg %p218
      %p429 = pneg %p215
      %p430 = pneg %p239
      %p431 = pneg %p236
      %p432 = pneg %p260
      %p433 = pneg %p257
      %p434 = pneg %p281
      %p435 = pneg %p278
      %p436 = pneg %p302
      %p437 = pneg %p299
      %p438 = pneg %p328
      %p439 = pneg %p325
      %s440 = smul.u32 2, %s24
      %p441 = scmp.lt.s32.totalorder %s440, 3
      %s442 = scalar_select %p441, %s440, 3
      %s443 = smul.addr %s442, 8
      %s444 = scalar_lea.vmem %s13, %s443
      %s445 = smul.u32 2, %s24
      %p446 = scmp.lt.s32.totalorder %s445, 3
      %s447 = scalar_select %p446, %s445, 3
      %s448 = smul.addr %s447, 4
      %s449 = scalar_lea.vmem %s0, %s448
      %s450 = smul.u32 2, %s24
      %p451 = scmp.lt.s32.totalorder %s24, 1
      %s452 = scalar_select %p451, %s24, 1
      %s453 = smul.addr %s452, 4
      %s454 = scalar_lea.vmem %s1, %s453
      %s455 = smul.u32 2, %s24
      %p456 = scmp.lt.s32.totalorder %s455, 3
      %s457 = scalar_select %p456, %s455, 3
      %s458 = smul.addr %s457, 8
      %s459 = scalar_lea.vmem %s13, %s458
      %s460 = smul.u32 2, %s24
      %v462 = vld [vmem:[%s449] sm:$0xf]
      %v463 = vld [vmem:[%s449 + $0x4] sm:$0xf]
      %v464 = vld [vmem:[%s454] sm:$0xf]
      %v465 = vld [vmem:[%s2] sm:$0xf]
      %v466 = vld [vmem:[%s2 + $0x4] sm:$0xf]
      %v467 = vld [vmem:[%s2 + $0x8] sm:$0x1]
      %v471 = vunpack.c.l.b16 %v465
      %v472 = vunpack.c.l.b16 %v466
      %v473 = vunpack.c.l.b16 %v467
      %v474 = vpack.c.b16 %v472, %v471
      %v475 = vpack.c.b16 %v473, %v473
      %v478 = vunpack.c.l.b16 %v462
      %v479 = vunpack.c.l.b16 %v463
      %v480 = vpack.c.b16 %v479, %v478
      %vm482 = vcmask 130048
      %v484 = vsel %vm482, %v474, 0
      %v487 = vsel %vm482, %v475, 0
      %489 = vmatprep.subr.bf16.mxu0 0
      %490 = vmatpush1.bf16.msra.mxu0 %v480
      %491 = vmatprep.subr.bf16.mxu0 0
      %492 = vmatpush1.bf16.msra.mxu0 0
      %493 = vmatprep.subr.bf16.mxu0 0
      %494 = vmatpush1.bf16.msra.mxu0 0
      %495 = vmatprep.subr.bf16.mxu0 0
      %496 = vmatpush1.bf16.msra.mxu0 0
      %497 = vmatprep.subr.bf16.mxu0 0
      %498 = vmatpush1.bf16.msra.mxu0 0
      %499 = vmatprep.subr.bf16.mxu0 0
      %500 = vmatpush1.bf16.msra.mxu0 0
      %501 = vmatprep.subr.bf16.mxu0 0
      %502 = vmatpush1.bf16.msra.mxu0 0
      %503 = vmatprep.subr.bf16.mxu0 0
      %504 = vmatpush1.bf16.msra.mxu0 0
      %505 = vmatprep.subr.bf16.mxu0 0
      %506 = vmatpush1.bf16.msra.mxu0 0
      %507 = vmatprep.subr.bf16.mxu0 0
      %508 = vmatpush1.bf16.msra.mxu0 0
      %509 = vmatprep.subr.bf16.mxu0 0
      %510 = vmatpush1.bf16.msra.mxu0 0
      %511 = vmatprep.subr.bf16.mxu0 0
      %512 = vmatpush1.bf16.msra.mxu0 0
      %513 = vmatprep.subr.bf16.mxu0 0
      %514 = vmatpush1.bf16.msra.mxu0 0
      %515 = vmatprep.subr.bf16.mxu0 0
      %516 = vmatpush1.bf16.msra.mxu0 0
      %517 = vmatprep.subr.bf16.mxu0 0
      %518 = vmatpush1.bf16.msra.mxu0 0
      %519 = vmatprep.subr.bf16.mxu0 0
      %520 = vmatpush1.bf16.msra.mxu0 0
      %521 = vmatprep.mubr.bf16.mxu0 0
      %522 = vmatmul.mubr.bf16.gmra.mrb[0].mxu0 %v484
      %v523 = vpop.f32.mrb[0].mxu0
      %v524 = vadd.f32 0.0, %v523
      %v525 = vpop.f32.mrb[0].mxu0
      %v526 = vpop.f32.mrb[0].mxu0
      %v527 = vadd.f32 0.0, %v526
      %v528 = vpop.f32.mrb[0].mxu0
      %529 = vmatprep.mubr.bf16.mxu0 0
      %530 = vmatmul.mubr.bf16.gmra.mrb[0].mxu0 %v487
      %v531 = vpop.f32.mrb[0].mxu0
      %v532 = vadd.f32 0.0, %v531
      %v533 = vpop.f32.mrb[0].mxu0
      %v534 = vpop.f32.mrb[0].mxu0
      %v535 = vpop.f32.mrb[0].mxu0
      %536 = vdwg.mxu0
      %v537 = vpack.c.bf16 %v527, %v524
      %v538 = vpack.c.bf16 %v532, %v532
      %v539 = vld [vmem:[%s3] sm:$0xf]
      %v540 = vld [vmem:[%s3 + $0x4] sm:$0xf]
      %v541 = vld [vmem:[%s3 + $0x8] sm:$0x1]
      %v545 = vunpack.c.l.b16 %v539
      %v546 = vunpack.c.l.b16 %v540
      %v547 = vunpack.c.l.b16 %v541
      %v548 = vpack.c.b16 %v546, %v545
      %v549 = vpack.c.b16 %v547, %v547
      %vm550 = vcmask 64512
      %v552 = vsel %vm550, %v548, 0
      %v555 = vsel %vm550, %v549, 0
      %vm557 = vcmask 1043456
      %v559 = vsel %vm557, %v464, 0
      %561 = vmatprep.subr.bf16.mxu0 0
      %562 = vmatpush1.bf16.msra.mxu0 %v559
      %563 = vmatprep.subr.bf16.mxu0 0
      %564 = vmatpush1.bf16.msra.mxu0 0
      %565 = vmatprep.subr.bf16.mxu0 0
      %566 = vmatpush1.bf16.msra.mxu0 0
      %567 = vmatprep.subr.bf16.mxu0 0
      %568 = vmatpush1.bf16.msra.mxu0 0
      %569 = vmatprep.subr.bf16.mxu0 0
      %570 = vmatpush1.bf16.msra.mxu0 0
      %571 = vmatprep.subr.bf16.mxu0 0
      %572 = vmatpush1.bf16.msra.mxu0 0
      %573 = vmatprep.subr.bf16.mxu0 0
      %574 = vmatpush1.bf16.msra.mxu0 0
      %575 = vmatprep.subr.bf16.mxu0 0
      %576 = vmatpush1.bf16.msra.mxu0 0
      %577 = vmatprep.subr.bf16.mxu0 0
      %578 = vmatpush1.bf16.msra.mxu0 0
      %579 = vmatprep.subr.bf16.mxu0 0
      %580 = vmatpush1.bf16.msra.mxu0 0
      %581 = vmatprep.subr.bf16.mxu0 0
      %582 = vmatpush1.bf16.msra.mxu0 0
      %583 = vmatprep.subr.bf16.mxu0 0
      %584 = vmatpush1.bf16.msra.mxu0 0
      %585 = vmatprep.subr.bf16.mxu0 0
      %586 = vmatpush1.bf16.msra.mxu0 0
      %587 = vmatprep.subr.bf16.mxu0 0
      %588 = vmatpush1.bf16.msra.mxu0 0
      %589 = vmatprep.subr.bf16.mxu0 0
      %590 = vmatpush1.bf16.msra.mxu0 0
      %591 = vmatprep.subr.bf16.mxu0 0
      %592 = vmatpush1.bf16.msra.mxu0 0
      %593 = vmatprep.mubr.bf16.mxu0 0
      %594 = vmatmul.mubr.bf16.gmra.mrb[0].mxu0 %v552
      %v595 = vpop.f32.mrb[0].mxu0
      %v596 = vadd.f32 0.0, %v595
      %v597 = vpop.f32.mrb[0].mxu0
      %v598 = vpop.f32.mrb[0].mxu0
      %v599 = vadd.f32 0.0, %v598
      %v600 = vpop.f32.mrb[0].mxu0
      %601 = vmatprep.mubr.bf16.mxu0 0
      %602 = vmatmul.mubr.bf16.gmra.mrb[0].mxu0 %v555
      %v603 = vpop.f32.mrb[0].mxu0
      %v604 = vadd.f32 0.0, %v603
      %v605 = vpop.f32.mrb[0].mxu0
      %v606 = vpop.f32.mrb[0].mxu0
      %v607 = vpop.f32.mrb[0].mxu0
      %608 = vdwg.mxu0
      %v609 = vpack.c.bf16 %v599, %v596
      %v610 = vpack.c.bf16 %v604, %v604
      %v611 = vld [vmem:[%s4] sm:$0xf]
      %v612 = vld [vmem:[%s4 + $0x4] sm:$0xf]
      %v613 = vld [vmem:[%s4 + $0x8] sm:$0x1]
      %v617 = vunpack.c.l.b16 %v611
      %v618 = vunpack.c.l.b16 %v612
      %v619 = vunpack.c.l.b16 %v613
      %v620 = vpack.c.b16 %v618, %v617
      %v621 = vpack.c.b16 %v619, %v619
      %v623 = vsel %vm550, %v620, 0
      %v626 = vsel %vm550, %v621, 0
      %628 = vmatprep.subr.bf16.mxu0 0
      %629 = vmatpush1.bf16.msra.mxu0 %v559
      %630 = vmatprep.subr.bf16.mxu0 0
      %631 = vmatpush1.bf16.msra.mxu0 0
      %632 = vmatprep.subr.bf16.mxu0 0
      %633 = vmatpush1.bf16.msra.mxu0 0
      %634 = vmatprep.subr.bf16.mxu0 0
      %635 = vmatpush1.bf16.msra.mxu0 0
      %636 = vmatprep.subr.bf16.mxu0 0
      %637 = vmatpush1.bf16.msra.mxu0 0
      %638 = vmatprep.subr.bf16.mxu0 0
      %639 = vmatpush1.bf16.msra.mxu0 0
      %640 = vmatprep.subr.bf16.mxu0 0
      %641 = vmatpush1.bf16.msra.mxu0 0
      %642 = vmatprep.subr.bf16.mxu0 0
      %643 = vmatpush1.bf16.msra.mxu0 0
      %644 = vmatprep.subr.bf16.mxu0 0
      %645 = vmatpush1.bf16.msra.mxu0 0
      %646 = vmatprep.subr.bf16.mxu0 0
      %647 = vmatpush1.bf16.msra.mxu0 0
      %648 = vmatprep.subr.bf16.mxu0 0
      %649 = vmatpush1.bf16.msra.mxu0 0
      %650 = vmatprep.subr.bf16.mxu0 0
      %651 = vmatpush1.bf16.msra.mxu0 0
      %652 = vmatprep.subr.bf16.mxu0 0
      %653 = vmatpush1.bf16.msra.mxu0 0
      %654 = vmatprep.subr.bf16.mxu0 0
      %655 = vmatpush1.bf16.msra.mxu0 0
      %656 = vmatprep.subr.bf16.mxu0 0
      %657 = vmatpush1.bf16.msra.mxu0 0
      %658 = vmatprep.subr.bf16.mxu0 0
      %659 = vmatpush1.bf16.msra.mxu0 0
      %660 = vmatprep.mubr.bf16.mxu0 0
      %661 = vmatmul.mubr.bf16.gmra.mrb[0].mxu0 %v623
      %v662 = vpop.f32.mrb[0].mxu0
      %v663 = vadd.f32 0.0, %v662
      %v664 = vpop.f32.mrb[0].mxu0
      %v665 = vpop.f32.mrb[0].mxu0
      %v666 = vadd.f32 0.0, %v665
      %v667 = vpop.f32.mrb[0].mxu0
      %668 = vmatprep.mubr.bf16.mxu0 0
      %669 = vmatmul.mubr.bf16.gmra.mrb[0].mxu0 %v626
      %v670 = vpop.f32.mrb[0].mxu0
      %v671 = vadd.f32 0.0, %v670
      %v672 = vpop.f32.mrb[0].mxu0
      %v673 = vpop.f32.mrb[0].mxu0
      %v674 = vpop.f32.mrb[0].mxu0
      %675 = vdwg.mxu0
      %v676 = vpack.c.bf16 %v666, %v663
      %v677 = vpack.c.bf16 %v671, %v671
      %v678 = vld [vmem:[%s5] sm:$0xff]
      %v679 = vld [vmem:[%s5 + $0x8] sm:$0xff]
      %v680 = vld [vmem:[%s5 + $0x10] sm:$0xff]
      %v681 = vld [vmem:[%s5 + $0x18] sm:$0xff]
      %v682 = vld [vmem:[%s5 + $0x20] sm:$0xff]
      %v683 = vld [vmem:[%s5 + $0x28] sm:$0xff]
      %v684 = vld [vmem:[%s5 + $0x30] sm:$0xff]
      %v685 = vld [vmem:[%s5 + $0x38] sm:$0xff]
      %v686 = vld [vmem:[%s5 + $0x40] sm:$0xff]
      %v687 = vld [vmem:[%s5 + $0x48] sm:$0xff]
      %v688 = vld [vmem:[%s5 + $0x50] sm:$0xff]
      %v689 = vld [vmem:[%s5 + $0x58] sm:$0xff]
      %v690 = vld [vmem:[%s5 + $0x60] sm:$0xff]
      %v691 = vld [vmem:[%s5 + $0x68] sm:$0xff]
      %v692 = vld [vmem:[%s5 + $0x70] sm:$0xff]
      %v693 = vld [vmem:[%s5 + $0x78] sm:$0xff]
      %v694 = vld [vmem:[%s6] sm:$0xff]
      %v695 = vld [vmem:[%s6 + $0x8] sm:$0xff]
      %v696 = vld [vmem:[%s6 + $0x10] sm:$0xff]
      %v697 = vld [vmem:[%s6 + $0x18] sm:$0xff]
      %v698 = vld [vmem:[%s6 + $0x20] sm:$0xff]
      %v699 = vld [vmem:[%s6 + $0x28] sm:$0xff]
      %v700 = vld [vmem:[%s6 + $0x30] sm:$0xff]
      %v701 = vld [vmem:[%s6 + $0x38] sm:$0xff]
      %v710 = vunpack.c.l.b16 %v694
      %v711 = vunpack.c.h.b16 %v694
      %v712 = vunpack.c.l.b16 %v695
      %v713 = vunpack.c.h.b16 %v695
      %v714 = vunpack.c.l.b16 %v696
      %v715 = vunpack.c.h.b16 %v696
      %v716 = vunpack.c.l.b16 %v697
      %v717 = vunpack.c.h.b16 %v697
      %v718 = vunpack.c.l.b16 %v698
      %v719 = vunpack.c.h.b16 %v698
      %v720 = vunpack.c.l.b16 %v699
      %v721 = vunpack.c.h.b16 %v699
      %v722 = vunpack.c.l.b16 %v700
      %v723 = vunpack.c.h.b16 %v700
      %v724 = vunpack.c.l.b16 %v701
      %v725 = vunpack.c.h.b16 %v701
      %v726 = vpack.c.b16 %v712, %v710
      %v727 = vpack.c.b16 %v713, %v711
      %v728 = vpack.c.b16 %v716, %v714
      %v729 = vpack.c.b16 %v717, %v715
      %v730 = vpack.c.b16 %v720, %v718
      %v731 = vpack.c.b16 %v721, %v719
      %v732 = vpack.c.b16 %v724, %v722
      %v733 = vpack.c.b16 %v725, %v723
      %vm742 = vcmask 523264
      %v744 = vsel %vm742, %v609, 0
      %v747 = vsel %vm742, %v610, 0
      %749 = vmatprep.subr.bf16.mxu0 %v727
      %750 = vmatpush1.bf16.msra.mxu0 %v726
      %751 = vmatprep.subr.bf16.mxu0 %v729
      %752 = vmatpush1.bf16.msra.mxu0 %v728
      %753 = vmatprep.subr.bf16.mxu0 %v731
      %754 = vmatpush1.bf16.msra.mxu0 %v730
      %755 = vmatprep.subr.bf16.mxu0 %v733
      %756 = vmatpush1.bf16.msra.mxu0 %v732
      %757 = vmatprep.subr.bf16.mxu0 0
      %758 = vmatpush1.bf16.msra.mxu0 0
      %759 = vmatprep.subr.bf16.mxu0 0
      %760 = vmatpush1.bf16.msra.mxu0 0
      %761 = vmatprep.subr.bf16.mxu0 0
      %762 = vmatpush1.bf16.msra.mxu0 0
      %763 = vmatprep.subr.bf16.mxu0 0
      %764 = vmatpush1.bf16.msra.mxu0 0
      %765 = vmatprep.subr.bf16.mxu0 0
      %766 = vmatpush1.bf16.msra.mxu0 0
      %767 = vmatprep.subr.bf16.mxu0 0
      %768 = vmatpush1.bf16.msra.mxu0 0
      %769 = vmatprep.subr.bf16.mxu0 0
      %770 = vmatpush1.bf16.msra.mxu0 0
      %771 = vmatprep.subr.bf16.mxu0 0
      %772 = vmatpush1.bf16.msra.mxu0 0
      %773 = vmatprep.subr.bf16.mxu0 0
      %774 = vmatpush1.bf16.msra.mxu0 0
      %775 = vmatprep.subr.bf16.mxu0 0
      %776 = vmatpush1.bf16.msra.mxu0 0
      %777 = vmatprep.subr.bf16.mxu0 0
      %778 = vmatpush1.bf16.msra.mxu0 0
      %779 = vmatprep.subr.bf16.mxu0 0
      %780 = vmatpush1.bf16.msra.mxu0 0
      %781 = vmatprep.mubr.bf16.mxu0 0
      %782 = vmatmul.mubr.bf16.gmra.mrb[0].mxu0 %v744
      %v783 = vpop.f32.mrb[0].mxu0
      %v784 = vadd.f32 0.0, %v783
      %v785 = vpop.f32.mrb[0].mxu0
      %v786 = vadd.f32 0.0, %v785
      %v787 = vpop.f32.mrb[0].mxu0
      %v788 = vadd.f32 0.0, %v787
      %v789 = vpop.f32.mrb[0].mxu0
      %v790 = vadd.f32 0.0, %v789
      %791 = vmatprep.mubr.bf16.mxu0 0
      %792 = vmatmul.mubr.bf16.gmra.mrb[0].mxu0 %v747
      %v793 = vpop.f32.mrb[0].mxu0
      %v794 = vadd.f32 0.0, %v793
      %v795 = vpop.f32.mrb[0].mxu0
      %v796 = vadd.f32 0.0, %v795
      %v797 = vpop.f32.mrb[0].mxu0
      %v798 = vpop.f32.mrb[0].mxu0
      %799 = vdwg.mxu0
      %v816 = vunpack.c.l.b16 %v678
      %v817 = vunpack.c.h.b16 %v678
      %v818 = vunpack.c.l.b16 %v679
      %v819 = vunpack.c.h.b16 %v679
      %v820 = vunpack.c.l.b16 %v680
      %v821 = vunpack.c.h.b16 %v680
      %v822 = vunpack.c.l.b16 %v681
      %v823 = vunpack.c.h.b16 %v681
      %v824 = vunpack.c.l.b16 %v682
      %v825 = vunpack.c.h.b16 %v682
      %v826 = vunpack.c.l.b16 %v683
      %v827 = vunpack.c.h.b16 %v683
      %v828 = vunpack.c.l.b16 %v684
      %v829 = vunpack.c.h.b16 %v684
      %v830 = vunpack.c.l.b16 %v685
      %v831 = vunpack.c.h.b16 %v685
      %v832 = vunpack.c.l.b16 %v686
      %v833 = vunpack.c.h.b16 %v686
      %v834 = vunpack.c.l.b16 %v687
      %v835 = vunpack.c.h.b16 %v687
      %v836 = vunpack.c.l.b16 %v688
      %v837 = vunpack.c.h.b16 %v688
      %v838 = vunpack.c.l.b16 %v689
      %v839 = vunpack.c.h.b16 %v689
      %v840 = vunpack.c.l.b16 %v690
      %v841 = vunpack.c.h.b16 %v690
      %v842 = vunpack.c.l.b16 %v691
      %v843 = vunpack.c.h.b16 %v691
      %v844 = vunpack.c.l.b16 %v692
      %v845 = vunpack.c.h.b16 %v692
      %v846 = vunpack.c.l.b16 %v693
      %v847 = vunpack.c.h.b16 %v693
      %v848 = vpack.c.b16 %v818, %v816
      %v849 = vpack.c.b16 %v819, %v817
      %v850 = vpack.c.b16 %v822, %v820
      %v851 = vpack.c.b16 %v823, %v821
      %v852 = vpack.c.b16 %v826, %v824
      %v853 = vpack.c.b16 %v827, %v825
      %v854 = vpack.c.b16 %v830, %v828
      %v855 = vpack.c.b16 %v831, %v829
      %v856 = vpack.c.b16 %v834, %v832
      %v857 = vpack.c.b16 %v835, %v833
      %v858 = vpack.c.b16 %v838, %v836
      %v859 = vpack.c.b16 %v839, %v837
      %v860 = vpack.c.b16 %v842, %v840
      %v861 = vpack.c.b16 %v843, %v841
      %v862 = vpack.c.b16 %v846, %v844
      %v863 = vpack.c.b16 %v847, %v845
      %880 = vmatprep.subr.bf16.mxu0 %v849
      %881 = vmatpush1.bf16.msra.mxu0 %v848
      %882 = vmatprep.subr.bf16.mxu0 %v851
      %883 = vmatpush1.bf16.msra.mxu0 %v850
      %884 = vmatprep.subr.bf16.mxu0 %v853
      %885 = vmatpush1.bf16.msra.mxu0 %v852
      %886 = vmatprep.subr.bf16.mxu0 %v855
      %887 = vmatpush1.bf16.msra.mxu0 %v854
      %888 = vmatprep.subr.bf16.mxu0 %v857
      %889 = vmatpush1.bf16.msra.mxu0 %v856
      %890 = vmatprep.subr.bf16.mxu0 %v859
      %891 = vmatpush1.bf16.msra.mxu0 %v858
      %892 = vmatprep.subr.bf16.mxu0 %v861
      %893 = vmatpush1.bf16.msra.mxu0 %v860
      %894 = vmatprep.subr.bf16.mxu0 %v863
      %895 = vmatpush1.bf16.msra.mxu0 %v862
      %896 = vmatprep.subr.bf16.mxu0 0
      %897 = vmatpush1.bf16.msra.mxu0 0
      %898 = vmatprep.subr.bf16.mxu0 0
      %899 = vmatpush1.bf16.msra.mxu0 0
      %900 = vmatprep.subr.bf16.mxu0 0
      %901 = vmatpush1.bf16.msra.mxu0 0
      %902 = vmatprep.subr.bf16.mxu0 0
      %903 = vmatpush1.bf16.msra.mxu0 0
      %904 = vmatprep.subr.bf16.mxu0 0
      %905 = vmatpush1.bf16.msra.mxu0 0
      %906 = vmatprep.subr.bf16.mxu0 0
      %907 = vmatpush1.bf16.msra.mxu0 0
      %908 = vmatprep.subr.bf16.mxu0 0
      %909 = vmatpush1.bf16.msra.mxu0 0
      %910 = vmatprep.subr.bf16.mxu0 0
      %911 = vmatpush1.bf16.msra.mxu0 0
      %912 = vmatprep.mubr.bf16.mxu0 0
      %913 = vmatmul.mubr.bf16.gmra.mrb[0].mxu0 %v537
      %v914 = vpop.f32.mrb[0].mxu0
      %v915 = vadd.f32 %v784, %v914
      %v916 = vpop.f32.mrb[0].mxu0
      %v917 = vadd.f32 %v786, %v916
      %v918 = vpop.f32.mrb[0].mxu0
      %v919 = vadd.f32 %v788, %v918
      %v920 = vpop.f32.mrb[0].mxu0
      %v921 = vadd.f32 %v790, %v920
      %922 = vmatprep.mubr.bf16.mxu0 0
      %923 = vmatmul.mubr.bf16.gmra.mrb[0].mxu0 %v538
      %v924 = vpop.f32.mrb[0].mxu0
      %v925 = vadd.f32 %v794, %v924
      %v926 = vpop.f32.mrb[0].mxu0
      %v927 = vadd.f32 %v796, %v926
      %v928 = vpop.f32.mrb[0].mxu0
      %v929 = vpop.f32.mrb[0].mxu0
      %930 = vdwg.mxu0
      %v931 = vld [vmem:[%s7] sm:$0xff]
      %v932 = vld [vmem:[%s7 + $0x8] sm:$0xff]
      %v933 = vld [vmem:[%s7 + $0x10] sm:$0xff]
      %v934 = vld [vmem:[%s7 + $0x18] sm:$0xff]
      %v935 = vld [vmem:[%s7 + $0x20] sm:$0xff]
      %v936 = vld [vmem:[%s7 + $0x28] sm:$0xff]
      %v937 = vld [vmem:[%s7 + $0x30] sm:$0xff]
      %v938 = vld [vmem:[%s7 + $0x38] sm:$0xff]
      %v947 = vunpack.c.l.b16 %v931
      %v948 = vunpack.c.h.b16 %v931
      %v949 = vunpack.c.l.b16 %v932
      %v950 = vunpack.c.h.b16 %v932
      %v951 = vunpack.c.l.b16 %v933
      %v952 = vunpack.c.h.b16 %v933
      %v953 = vunpack.c.l.b16 %v934
      %v954 = vunpack.c.h.b16 %v934
      %v955 = vunpack.c.l.b16 %v935
      %v956 = vunpack.c.h.b16 %v935
      %v957 = vunpack.c.l.b16 %v936
      %v958 = vunpack.c.h.b16 %v936
      %v959 = vunpack.c.l.b16 %v937
      %v960 = vunpack.c.h.b16 %v937
      %v961 = vunpack.c.l.b16 %v938
      %v962 = vunpack.c.h.b16 %v938
      %v963 = vpack.c.b16 %v949, %v947
      %v964 = vpack.c.b16 %v950, %v948
      %v965 = vpack.c.b16 %v953, %v951
      %v966 = vpack.c.b16 %v954, %v952
      %v967 = vpack.c.b16 %v957, %v955
      %v968 = vpack.c.b16 %v958, %v956
      %v969 = vpack.c.b16 %v961, %v959
      %v970 = vpack.c.b16 %v962, %v960
      %v980 = vsel %vm742, %v676, 0
      %v983 = vsel %vm742, %v677, 0
      %985 = vmatprep.subr.bf16.mxu0 %v964
      %986 = vmatpush1.bf16.msra.mxu0 %v963
      %987 = vmatprep.subr.bf16.mxu0 %v966
      %988 = vmatpush1.bf16.msra.mxu0 %v965
      %989 = vmatprep.subr.bf16.mxu0 %v968
      %990 = vmatpush1.bf16.msra.mxu0 %v967
      %991 = vmatprep.subr.bf16.mxu0 %v970
      %992 = vmatpush1.bf16.msra.mxu0 %v969
      %993 = vmatprep.subr.bf16.mxu0 0
      %994 = vmatpush1.bf16.msra.mxu0 0
      %995 = vmatprep.subr.bf16.mxu0 0
      %996 = vmatpush1.bf16.msra.mxu0 0
      %997 = vmatprep.subr.bf16.mxu0 0
      %998 = vmatpush1.bf16.msra.mxu0 0
      %999 = vmatprep.subr.bf16.mxu0 0
      %1000 = vmatpush1.bf16.msra.mxu0 0
      %1001 = vmatprep.subr.bf16.mxu0 0
      %1002 = vmatpush1.bf16.msra.mxu0 0
      %1003 = vmatprep.subr.bf16.mxu0 0
      %1004 = vmatpush1.bf16.msra.mxu0 0
      %1005 = vmatprep.subr.bf16.mxu0 0
      %1006 = vmatpush1.bf16.msra.mxu0 0
      %1007 = vmatprep.subr.bf16.mxu0 0
      %1008 = vmatpush1.bf16.msra.mxu0 0
      %1009 = vmatprep.subr.bf16.mxu0 0
      %1010 = vmatpush1.bf16.msra.mxu0 0
      %1011 = vmatprep.subr.bf16.mxu0 0
      %1012 = vmatpush1.bf16.msra.mxu0 0
      %1013 = vmatprep.subr.bf16.mxu0 0
      %1014 = vmatpush1.bf16.msra.mxu0 0
      %1015 = vmatprep.subr.bf16.mxu0 0
      %1016 = vmatpush1.bf16.msra.mxu0 0
      %1017 = vmatprep.mubr.bf16.mxu0 0
      %1018 = vmatmul.mubr.bf16.gmra.mrb[0].mxu0 %v980
      %v1019 = vpop.f32.mrb[0].mxu0
      %v1020 = vadd.f32 0.0, %v1019
      %v1021 = vpop.f32.mrb[0].mxu0
      %v1022 = vadd.f32 0.0, %v1021
      %v1023 = vpop.f32.mrb[0].mxu0
      %v1024 = vadd.f32 0.0, %v1023
      %v1025 = vpop.f32.mrb[0].mxu0
      %v1026 = vadd.f32 0.0, %v1025
      %1027 = vmatprep.mubr.bf16.mxu0 0
      %1028 = vmatmul.mubr.bf16.gmra.mrb[0].mxu0 %v983
      %v1029 = vpop.f32.mrb[0].mxu0
      %v1030 = vadd.f32 0.0, %v1029
      %v1031 = vpop.f32.mrb[0].mxu0
      %v1032 = vadd.f32 0.0, %v1031
      %v1033 = vpop.f32.mrb[0].mxu0
      %v1034 = vpop.f32.mrb[0].mxu0
      %1035 = vdwg.mxu0
      %v1036 = vadd.f32 %v915, %v1020
      %v1037 = vadd.f32 %v917, %v1022
      %v1038 = vadd.f32 %v919, %v1024
      %v1039 = vadd.f32 %v921, %v1026
      %v1040 = vadd.f32 %v925, %v1030
      %v1041 = vadd.f32 %v927, %v1032
      %v1042 = vlaneseq
      %v1043 = vshrl.u32 %v1042, 7
      %v1044 = vadd.s32 %v1043, 8
      %v1045 = vadd.s32 %v1043, 16
      %vm1046 = vcmp.lt.s32.totalorder %v1043, 0
      %v1047 = vsub.s32 0, %v1043
      %v1048 = vsel %vm1046, %v1047, %v1043
      %v1049 = vmul.u32.u64.compose %v1048, 3817748708
      %v1050 = vextract.low.u32 %v1049
      %v1051 = vextract.high.u32 %v1049
      %v1052 = vshrl.u32 %v1051, 4
      %v1053 = vmul.u32 %v1052, 18
      %v1054 = vsub.s32 %v1048, %v1053
      %v1055 = vsub.s32 0, %v1054
      %v1056 = vsel %vm1046, %v1055, %v1054
      %vm1057 = vcmp.lt.s32.totalorder %v1044, 0
      %v1058 = vsub.s32 0, %v1044
      %v1059 = vsel %vm1057, %v1058, %v1044
      %v1060 = vmul.u32.u64.compose %v1059, 3817748708
      %v1061 = vextract.low.u32 %v1060
      %v1062 = vextract.high.u32 %v1060
      %v1063 = vshrl.u32 %v1062, 4
      %v1064 = vmul.u32 %v1063, 18
      %v1065 = vsub.s32 %v1059, %v1064
      %v1066 = vsub.s32 0, %v1065
      %v1067 = vsel %vm1057, %v1066, %v1065
      %vm1068 = vcmp.lt.s32.totalorder %v1045, 0
      %v1069 = vsub.s32 0, %v1045
      %v1070 = vsel %vm1068, %v1069, %v1045
      %v1071 = vmul.u32.u64.compose %v1070, 3817748708
      %v1072 = vextract.low.u32 %v1071
      %v1073 = vextract.high.u32 %v1071
      %v1074 = vshrl.u32 %v1073, 4
      %v1075 = vmul.u32 %v1074, 18
      %v1076 = vsub.s32 %v1070, %v1075
      %v1077 = vsub.s32 0, %v1076
      %v1078 = vsel %vm1068, %v1077, %v1076
      %vm1079 = vcmp.ne.s32.totalorder %v1056, 0
      %vm1080 = vcmp.ne.s32.totalorder %v1067, 0
      %vm1081 = vcmp.ne.s32.totalorder %v1078, 0
      %vm1082 = vcmp.lt.s32.totalorder %v1056, 0
      %vm1083 = vcmp.lt.s32.totalorder %v1067, 0
      %vm1084 = vcmp.lt.s32.totalorder %v1078, 0
      %vm1085 = vmand %vm1082, %vm1079
      %vm1086 = vmand %vm1083, %vm1080
      %vm1087 = vmand %vm1084, %vm1081
      %v1088 = vadd.s32 %v1056, 18
      %v1089 = vadd.s32 %v1067, 18
      %v1090 = vadd.s32 %v1078, 18
      %v1091 = vsel %vm1085, %v1088, %v1056
      %v1092 = vsel %vm1086, %v1089, %v1067
      %v1093 = vsel %vm1087, %v1090, %v1078
      %vm1094 = vcmp.ge.s32.totalorder %v1091, 1
      %vm1095 = vcmp.ge.s32.totalorder %v1092, 1
      %vm1096 = vcmp.ge.s32.totalorder %v1093, 1
      %vm1097 = vcmp.le.s32.totalorder %v1091, 16
      %vm1098 = vcmp.le.s32.totalorder %v1092, 16
      %vm1099 = vcmp.le.s32.totalorder %v1093, 16
      %vm1100 = vmand %vm1094, %vm1097
      %vm1101 = vmand %vm1095, %vm1098
      %vm1102 = vmand %vm1096, %vm1099
      %v1103 = vld [vmem:[%s10] sm:$0x3]
      %v1104 = vsel %vm1100, 1, 0
      %v1105 = vsel %vm1101, 1, 0
      %v1106 = vsel %vm1102, 1, 0
      %vm1107 = vcmp.eq.s32.totalorder %v1104, 1
      %vm1108 = vcmp.eq.s32.totalorder %v1105, 1
      %vm1109 = vcmp.eq.s32.totalorder %v1106, 1
      %v1111 = vlaneseq
      %v1112 = vshrl.u32 %v1111, 7
      %v1113 = vsub.s32 0, %v1112
      %v1114 = vrot.slane %v1103, %v1113
      %v1115 = vlaneseq
      %v1116 = vshrl.u32 %v1115, 7
      %v1117 = vsub.s32 1, %v1116
      %v1118 = vrot.slane %v1103, %v1117
      %v1121 = vsel %vm1107, %v1114, 0.0
      %v1122 = vsel %vm1107, %v1118, 0.0
      %v1123 = vsel %vm1108, %v1114, 0.0
      %v1124 = vsel %vm1108, %v1118, 0.0
      %v1125 = vsel %vm1109, %v1114, 0.0
      %v1126 = vsel %vm1109, %v1118, 0.0
      %v1127 = vadd.f32 %v1036, %v1121
      %v1128 = vadd.f32 %v1037, %v1122
      %v1129 = vadd.f32 %v1038, %v1123
      %v1130 = vadd.f32 %v1039, %v1124
      %v1131 = vadd.f32 %v1040, %v1125
      %v1132 = vadd.f32 %v1041, %v1126
      %v1133 = vpack.c.bf16 %v1129, %v1127
      %v1134 = vpack.c.bf16 %v1130, %v1128
      %v1135 = vpack.c.bf16 %v1131, %v1131
      %v1136 = vpack.c.bf16 %v1132, %v1132
      %v1141 = vunpack.c.l.b16 %v1133
      %v1142 = vunpack.c.l.b16 %v1134
      %v1143 = vunpack.c.h.b16 %v1133
      %v1144 = vunpack.c.h.b16 %v1134
      %v1145 = vunpack.c.l.b16 %v1135
      %v1146 = vunpack.c.l.b16 %v1136
      %v1147 = vpack.c.b16 %v1142, %v1141
      %v1148 = vpack.c.b16 %v1144, %v1143
      %v1149 = vpack.c.b16 %v1146, %v1145
      %vm1153 = vcmask 523268
      %vm1154 = vmor %vm1153, %vm557
      %1155 = vst.msk [vmem:[#allocation2] sm:$0xff] %vm1154, %v1147
      %1156 = vst.msk [vmem:[#allocation2 + $0x8] sm:$0xff] %vm1154, %v1148
      %vm1157 = vcmask 1040384
      %vm1158 = vcmask 520196
      %vm1159 = vmor %vm1158, %vm1157
      %1160 = vst.msk [vmem:[#allocation2 + $0x10] sm:$0x11] %vm1159, %v1149
      %v1161 = vld [vmem:[#allocation2] sm:$0xff]
      %v1162 = vld [vmem:[#allocation2 + $0x8] sm:$0xff]
      %v1163 = vld [vmem:[%s8] sm:$0xf]
      %v1164 = vld [vmem:[%s8 + $0x4] sm:$0xf]
      %v1165 = vld [vmem:[%s8 + $0x8] sm:$0xf]
      %v1166 = vld [vmem:[%s8 + $0xc] sm:$0xf]
      %v1167 = vld [vmem:[%s8 + $0x10] sm:$0xf]
      %v1168 = vld [vmem:[%s8 + $0x14] sm:$0xf]
      %v1169 = vld [vmem:[%s8 + $0x18] sm:$0xf]
      %v1170 = vld [vmem:[%s8 + $0x1c] sm:$0xf]
      %v1171 = vld [vmem:[%s8 + $0x20] sm:$0xf]
      %v1172 = vld [vmem:[%s8 + $0x24] sm:$0xf]
      %v1173 = vld [vmem:[%s8 + $0x28] sm:$0xf]
      %v1174 = vld [vmem:[%s8 + $0x2c] sm:$0xf]
      %v1175 = vld [vmem:[%s8 + $0x30] sm:$0xf]
      %v1176 = vld [vmem:[%s8 + $0x34] sm:$0xf]
      %v1177 = vld [vmem:[%s8 + $0x38] sm:$0xf]
      %v1178 = vld [vmem:[%s8 + $0x3c] sm:$0xf]
      %v1179 = vld [vmem:[%s8 + $0x40] sm:$0xf]
      %v1180 = vld [vmem:[%s8 + $0x44] sm:$0xf]
      %v1181 = vld [vmem:[%s8 + $0x48] sm:$0xf]
      %v1182 = vld [vmem:[%s8 + $0x4c] sm:$0xf]
      %v1183 = vld [vmem:[%s8 + $0x50] sm:$0xf]
      %v1184 = vld [vmem:[%s8 + $0x54] sm:$0xf]
      %v1185 = vld [vmem:[%s8 + $0x58] sm:$0xf]
      %v1186 = vld [vmem:[%s8 + $0x5c] sm:$0xf]
      %v1187 = vld [vmem:[#allocation2 + $0x10] sm:$0x11]
      %s1188 = scalar_lea.vmem %s8, 96
      %v1189 = vld [vmem:[%s1188] sm:$0xf]
      %v1190 = vld [vmem:[%s1188 + $0x4] sm:$0xf]
      %v1191 = vld [vmem:[%s1188 + $0x8] sm:$0xf]
      %v1192 = vld [vmem:[%s1188 + $0xc] sm:$0xf]
      %v1193 = vld [vmem:[%s1188 + $0x10] sm:$0xf]
      %v1194 = vld [vmem:[%s1188 + $0x14] sm:$0xf]
      %v1195 = vld [vmem:[%s1188 + $0x18] sm:$0xf]
      %v1196 = vld [vmem:[%s1188 + $0x1c] sm:$0xf]
      %v1197 = vld [vmem:[%s1188 + $0x20] sm:$0xf]
      %v1198 = vld [vmem:[%s1188 + $0x24] sm:$0xf]
      %v1199 = vld [vmem:[%s1188 + $0x28] sm:$0xf]
      %v1200 = vld [vmem:[%s1188 + $0x2c] sm:$0xf]
      %v1201 = vld [vmem:[%s1188 + $0x30] sm:$0xf]
      %v1202 = vld [vmem:[%s1188 + $0x34] sm:$0xf]
      %v1203 = vld [vmem:[%s1188 + $0x38] sm:$0xf]
      %v1204 = vld [vmem:[%s1188 + $0x3c] sm:$0xf]
      %v1205 = vld [vmem:[%s1188 + $0x40] sm:$0xf]
      %v1206 = vld [vmem:[%s1188 + $0x44] sm:$0xf]
      %v1207 = vld [vmem:[%s1188 + $0x48] sm:$0xf]
      %v1208 = vld [vmem:[%s1188 + $0x4c] sm:$0xf]
      %v1209 = vld [vmem:[%s1188 + $0x50] sm:$0xf]
      %v1210 = vld [vmem:[%s1188 + $0x54] sm:$0xf]
      %v1211 = vld [vmem:[%s1188 + $0x58] sm:$0xf]
      %v1212 = vld [vmem:[%s1188 + $0x5c] sm:$0xf]
      %v1216 = vunpack.c.l.b16 %v1161
      %v1217 = vunpack.c.h.b16 %v1161
      %v1218 = vunpack.c.l.b16 %v1162
      %v1219 = vunpack.c.h.b16 %v1162
      %v1220 = vunpack.c.l.b16 %v1187
      %v1221 = vunpack.c.h.b16 %v1187
      %v1222 = vpack.c.b16 %v1218, %v1216
      %v1223 = vpack.c.b16 %v1219, %v1217
      %v1224 = vpack.c.b16 %v1220, %v1220
      %v1225 = vpack.c.b16 %v1221, %v1221
      %vm1226 = vsmask.f32 7424
      %v1228 = vshrl.u32 %v1222, 16
      %v1230 = vshll.u32 %v1222, 16
      %v1232 = vrot.slane %v1230, 1
      %v1233 = vor.u32 %v1228, %v1232
      %v1235 = vshll.u32 %v1224, 16
      %v1237 = vrot.slane %v1235, 1
      %v1238 = vsel %vm1226, %v1233, %v1237
      %v1240 = vshrl.u32 %v1223, 16
      %v1242 = vshll.u32 %v1223, 16
      %v1244 = vrot.slane %v1242, 1
      %v1245 = vor.u32 %v1240, %v1244
      %v1247 = vshll.u32 %v1225, 16
      %v1249 = vrot.slane %v1247, 1
      %v1250 = vsel %vm1226, %v1245, %v1249
      %v1276 = vunpack.c.l.b16 %v1189
      %v1277 = vunpack.c.l.b16 %v1190
      %v1278 = vunpack.c.l.b16 %v1191
      %v1279 = vunpack.c.l.b16 %v1192
      %v1280 = vunpack.c.l.b16 %v1193
      %v1281 = vunpack.c.l.b16 %v1194
      %v1282 = vunpack.c.l.b16 %v1195
      %v1283 = vunpack.c.l.b16 %v1196
      %v1284 = vunpack.c.l.b16 %v1197
      %v1285 = vunpack.c.l.b16 %v1198
      %v1286 = vunpack.c.l.b16 %v1199
      %v1287 = vunpack.c.l.b16 %v1200
      %v1288 = vunpack.c.l.b16 %v1201
      %v1289 = vunpack.c.l.b16 %v1202
      %v1290 = vunpack.c.l.b16 %v1203
      %v1291 = vunpack.c.l.b16 %v1204
      %v1292 = vunpack.c.l.b16 %v1205
      %v1293 = vunpack.c.l.b16 %v1206
      %v1294 = vunpack.c.l.b16 %v1207
      %v1295 = vunpack.c.l.b16 %v1208
      %v1296 = vunpack.c.l.b16 %v1209
      %v1297 = vunpack.c.l.b16 %v1210
      %v1298 = vunpack.c.l.b16 %v1211
      %v1299 = vunpack.c.l.b16 %v1212
      %v1300 = vpack.c.b16 %v1277, %v1276
      %v1301 = vpack.c.b16 %v1279, %v1278
      %v1302 = vpack.c.b16 %v1281, %v1280
      %v1303 = vpack.c.b16 %v1283, %v1282
      %v1304 = vpack.c.b16 %v1285, %v1284
      %v1305 = vpack.c.b16 %v1287, %v1286
      %v1306 = vpack.c.b16 %v1289, %v1288
      %v1307 = vpack.c.b16 %v1291, %v1290
      %v1308 = vpack.c.b16 %v1293, %v1292
      %v1309 = vpack.c.b16 %v1295, %v1294
      %v1310 = vpack.c.b16 %v1297, %v1296
      %v1311 = vpack.c.b16 %v1299, %v1298
      %v1325 = vsel %vm742, %v1250, 0
      %1327 = vmatprep.subr.bf16.mxu0 0
      %1328 = vmatpush1.bf16.msra.mxu0 %v1300
      %1329 = vmatprep.subr.bf16.mxu0 0
      %1330 = vmatpush1.bf16.msra.mxu0 %v1301
      %1331 = vmatprep.subr.bf16.mxu0 0
      %1332 = vmatpush1.bf16.msra.mxu0 %v1302
      %1333 = vmatprep.subr.bf16.mxu0 0
      %1334 = vmatpush1.bf16.msra.mxu0 %v1303
      %1335 = vmatprep.subr.bf16.mxu0 0
      %1336 = vmatpush1.bf16.msra.mxu0 %v1304
      %1337 = vmatprep.subr.bf16.mxu0 0
      %1338 = vmatpush1.bf16.msra.mxu0 %v1305
      %1339 = vmatprep.subr.bf16.mxu0 0
      %1340 = vmatpush1.bf16.msra.mxu0 %v1306
      %1341 = vmatprep.subr.bf16.mxu0 0
      %1342 = vmatpush1.bf16.msra.mxu0 %v1307
      %1343 = vmatprep.subr.bf16.mxu0 0
      %1344 = vmatpush1.bf16.msra.mxu0 %v1308
      %1345 = vmatprep.subr.bf16.mxu0 0
      %1346 = vmatpush1.bf16.msra.mxu0 %v1309
      %1347 = vmatprep.subr.bf16.mxu0 0
      %1348 = vmatpush1.bf16.msra.mxu0 %v1310
      %1349 = vmatprep.subr.bf16.mxu0 0
      %1350 = vmatpush1.bf16.msra.mxu0 %v1311
      %1351 = vmatprep.subr.bf16.mxu0 0
      %1352 = vmatpush1.bf16.msra.mxu0 0
      %1353 = vmatprep.subr.bf16.mxu0 0
      %1354 = vmatpush1.bf16.msra.mxu0 0
      %1355 = vmatprep.subr.bf16.mxu0 0
      %1356 = vmatpush1.bf16.msra.mxu0 0
      %1357 = vmatprep.subr.bf16.mxu0 0
      %1358 = vmatpush1.bf16.msra.mxu0 0
      %1359 = vmatprep.mubr.bf16.mxu0 %v1325
      %1360 = vmatmul.mubr.bf16.gmra.mrb[0].mxu0 %v1238
      %v1361 = vpop.f32.mrb[0].mxu0
      %v1362 = vadd.f32 0.0, %v1361
      %v1363 = vpop.f32.mrb[0].mxu0
      %v1364 = vpop.f32.mrb[0].mxu0
      %v1365 = vadd.f32 0.0, %v1364
      %v1366 = vpop.f32.mrb[0].mxu0
      %1367 = vdwg.mxu0
      %v1393 = vunpack.c.l.b16 %v1163
      %v1394 = vunpack.c.l.b16 %v1164
      %v1395 = vunpack.c.l.b16 %v1165
      %v1396 = vunpack.c.l.b16 %v1166
      %v1397 = vunpack.c.l.b16 %v1167
      %v1398 = vunpack.c.l.b16 %v1168
      %v1399 = vunpack.c.l.b16 %v1169
      %v1400 = vunpack.c.l.b16 %v1170
      %v1401 = vunpack.c.l.b16 %v1171
      %v1402 = vunpack.c.l.b16 %v1172
      %v1403 = vunpack.c.l.b16 %v1173
      %v1404 = vunpack.c.l.b16 %v1174
      %v1405 = vunpack.c.l.b16 %v1175
      %v1406 = vunpack.c.l.b16 %v1176
      %v1407 = vunpack.c.l.b16 %v1177
      %v1408 = vunpack.c.l.b16 %v1178
      %v1409 = vunpack.c.l.b16 %v1179
      %v1410 = vunpack.c.l.b16 %v1180
      %v1411 = vunpack.c.l.b16 %v1181
      %v1412 = vunpack.c.l.b16 %v1182
      %v1413 = vunpack.c.l.b16 %v1183
      %v1414 = vunpack.c.l.b16 %v1184
      %v1415 = vunpack.c.l.b16 %v1185
      %v1416 = vunpack.c.l.b16 %v1186
      %v1417 = vpack.c.b16 %v1394, %v1393
      %v1418 = vpack.c.b16 %v1396, %v1395
      %v1419 = vpack.c.b16 %v1398, %v1397
      %v1420 = vpack.c.b16 %v1400, %v1399
      %v1421 = vpack.c.b16 %v1402, %v1401
      %v1422 = vpack.c.b16 %v1404, %v1403
      %v1423 = vpack.c.b16 %v1406, %v1405
      %v1424 = vpack.c.b16 %v1408, %v1407
      %v1425 = vpack.c.b16 %v1410, %v1409
      %v1426 = vpack.c.b16 %v1412, %v1411
      %v1427 = vpack.c.b16 %v1414, %v1413
      %v1428 = vpack.c.b16 %v1416, %v1415
      %v1441 = vsel %vm742, %v1223, 0
      %1443 = vmatprep.subr.bf16.mxu0 0
      %1444 = vmatpush1.bf16.msra.mxu0 %v1417
      %1445 = vmatprep.subr.bf16.mxu0 0
      %1446 = vmatpush1.bf16.msra.mxu0 %v1418
      %1447 = vmatprep.subr.bf16.mxu0 0
      %1448 = vmatpush1.bf16.msra.mxu0 %v1419
      %1449 = vmatprep.subr.bf16.mxu0 0
      %1450 = vmatpush1.bf16.msra.mxu0 %v1420
      %1451 = vmatprep.subr.bf16.mxu0 0
      %1452 = vmatpush1.bf16.msra.mxu0 %v1421
      %1453 = vmatprep.subr.bf16.mxu0 0
      %1454 = vmatpush1.bf16.msra.mxu0 %v1422
      %1455 = vmatprep.subr.bf16.mxu0 0
      %1456 = vmatpush1.bf16.msra.mxu0 %v1423
      %1457 = vmatprep.subr.bf16.mxu0 0
      %1458 = vmatpush1.bf16.msra.mxu0 %v1424
      %1459 = vmatprep.subr.bf16.mxu0 0
      %1460 = vmatpush1.bf16.msra.mxu0 %v1425
      %1461 = vmatprep.subr.bf16.mxu0 0
      %1462 = vmatpush1.bf16.msra.mxu0 %v1426
      %1463 = vmatprep.subr.bf16.mxu0 0
      %1464 = vmatpush1.bf16.msra.mxu0 %v1427
      %1465 = vmatprep.subr.bf16.mxu0 0
      %1466 = vmatpush1.bf16.msra.mxu0 %v1428
      %1467 = vmatprep.subr.bf16.mxu0 0
      %1468 = vmatpush1.bf16.msra.mxu0 0
      %1469 = vmatprep.subr.bf16.mxu0 0
      %1470 = vmatpush1.bf16.msra.mxu0 0
      %1471 = vmatprep.subr.bf16.mxu0 0
      %1472 = vmatpush1.bf16.msra.mxu0 0
      %1473 = vmatprep.subr.bf16.mxu0 0
      %1474 = vmatpush1.bf16.msra.mxu0 0
      %1475 = vmatprep.mubr.bf16.mxu0 %v1441
      %1476 = vmatmul.mubr.bf16.gmra.mrb[0].mxu0 %v1222
      %v1477 = vpop.f32.mrb[0].mxu0
      %v1478 = vadd.f32 %v1362, %v1477
      %v1479 = vpop.f32.mrb[0].mxu0
      %v1480 = vpop.f32.mrb[0].mxu0
      %v1481 = vadd.f32 %v1365, %v1480
      %v1482 = vpop.f32.mrb[0].mxu0
      %1483 = vdwg.mxu0
      %v1484 = vld [vmem:[#allocation2] sm:$0xee]
      %s1485 = scalar_lea.vmem %s8, 192
      %v1486 = vld [vmem:[%s1485] sm:$0xf]
      %v1487 = vld [vmem:[%s1485 + $0x4] sm:$0xf]
      %v1488 = vld [vmem:[%s1485 + $0x8] sm:$0xf]
      %v1489 = vld [vmem:[%s1485 + $0xc] sm:$0xf]
      %v1490 = vld [vmem:[%s1485 + $0x10] sm:$0xf]
      %v1491 = vld [vmem:[%s1485 + $0x14] sm:$0xf]
      %v1492 = vld [vmem:[%s1485 + $0x18] sm:$0xf]
      %v1493 = vld [vmem:[%s1485 + $0x1c] sm:$0xf]
      %v1494 = vld [vmem:[%s1485 + $0x20] sm:$0xf]
      %v1495 = vld [vmem:[%s1485 + $0x24] sm:$0xf]
      %v1496 = vld [vmem:[%s1485 + $0x28] sm:$0xf]
      %v1497 = vld [vmem:[%s1485 + $0x2c] sm:$0xf]
      %v1498 = vld [vmem:[%s1485 + $0x30] sm:$0xf]
      %v1499 = vld [vmem:[%s1485 + $0x34] sm:$0xf]
      %v1500 = vld [vmem:[%s1485 + $0x38] sm:$0xf]
      %v1501 = vld [vmem:[%s1485 + $0x3c] sm:$0xf]
      %v1502 = vld [vmem:[%s1485 + $0x40] sm:$0xf]
      %v1503 = vld [vmem:[%s1485 + $0x44] sm:$0xf]
      %v1504 = vld [vmem:[%s1485 + $0x48] sm:$0xf]
      %v1505 = vld [vmem:[%s1485 + $0x4c] sm:$0xf]
      %v1506 = vld [vmem:[%s1485 + $0x50] sm:$0xf]
      %v1507 = vld [vmem:[%s1485 + $0x54] sm:$0xf]
      %v1508 = vld [vmem:[%s1485 + $0x58] sm:$0xf]
      %v1509 = vld [vmem:[%s1485 + $0x5c] sm:$0xf]
      %v1511 = vunpack.c.l.b16 %v1484
      %v1512 = vunpack.c.h.b16 %v1484
      %v1513 = vpack.c.b16 %v1218, %v1511
      %v1514 = vpack.c.b16 %v1219, %v1512
      %vm1515 = vcmask 1046528
      %v1516 = vrot.slane %v1513, 1
      %v1517 = vrot.slane %v1224, 1
      %v1518 = vsel %vm1515, %v1516, %v1517
      %v1519 = vrot.slane %v1514, 1
      %v1520 = vrot.slane %v1225, 1
      %v1521 = vsel %vm1515, %v1519, %v1520
      %v1547 = vunpack.c.l.b16 %v1486
      %v1548 = vunpack.c.l.b16 %v1487
      %v1549 = vunpack.c.l.b16 %v1488
      %v1550 = vunpack.c.l.b16 %v1489
      %v1551 = vunpack.c.l.b16 %v1490
      %v1552 = vunpack.c.l.b16 %v1491
      %v1553 = vunpack.c.l.b16 %v1492
      %v1554 = vunpack.c.l.b16 %v1493
      %v1555 = vunpack.c.l.b16 %v1494
      %v1556 = vunpack.c.l.b16 %v1495
      %v1557 = vunpack.c.l.b16 %v1496
      %v1558 = vunpack.c.l.b16 %v1497
      %v1559 = vunpack.c.l.b16 %v1498
      %v1560 = vunpack.c.l.b16 %v1499
      %v1561 = vunpack.c.l.b16 %v1500
      %v1562 = vunpack.c.l.b16 %v1501
      %v1563 = vunpack.c.l.b16 %v1502
      %v1564 = vunpack.c.l.b16 %v1503
      %v1565 = vunpack.c.l.b16 %v1504
      %v1566 = vunpack.c.l.b16 %v1505
      %v1567 = vunpack.c.l.b16 %v1506
      %v1568 = vunpack.c.l.b16 %v1507
      %v1569 = vunpack.c.l.b16 %v1508
      %v1570 = vunpack.c.l.b16 %v1509
      %v1571 = vpack.c.b16 %v1548, %v1547
      %v1572 = vpack.c.b16 %v1550, %v1549
      %v1573 = vpack.c.b16 %v1552, %v1551
      %v1574 = vpack.c.b16 %v1554, %v1553
      %v1575 = vpack.c.b16 %v1556, %v1555
      %v1576 = vpack.c.b16 %v1558, %v1557
      %v1577 = vpack.c.b16 %v1560, %v1559
      %v1578 = vpack.c.b16 %v1562, %v1561
      %v1579 = vpack.c.b16 %v1564, %v1563
      %v1580 = vpack.c.b16 %v1566, %v1565
      %v1581 = vpack.c.b16 %v1568, %v1567
      %v1582 = vpack.c.b16 %v1570, %v1569
      %v1596 = vsel %vm742, %v1521, 0
      %1598 = vmatprep.subr.bf16.mxu0 0
      %1599 = vmatpush1.bf16.msra.mxu0 %v1571
      %1600 = vmatprep.subr.bf16.mxu0 0
      %1601 = vmatpush1.bf16.msra.mxu0 %v1572
      %1602 = vmatprep.subr.bf16.mxu0 0
      %1603 = vmatpush1.bf16.msra.mxu0 %v1573
      %1604 = vmatprep.subr.bf16.mxu0 0
      %1605 = vmatpush1.bf16.msra.mxu0 %v1574
      %1606 = vmatprep.subr.bf16.mxu0 0
      %1607 = vmatpush1.bf16.msra.mxu0 %v1575
      %1608 = vmatprep.subr.bf16.mxu0 0
      %1609 = vmatpush1.bf16.msra.mxu0 %v1576
      %1610 = vmatprep.subr.bf16.mxu0 0
      %1611 = vmatpush1.bf16.msra.mxu0 %v1577
      %1612 = vmatprep.subr.bf16.mxu0 0
      %1613 = vmatpush1.bf16.msra.mxu0 %v1578
      %1614 = vmatprep.subr.bf16.mxu0 0
      %1615 = vmatpush1.bf16.msra.mxu0 %v1579
      %1616 = vmatprep.subr.bf16.mxu0 0
      %1617 = vmatpush1.bf16.msra.mxu0 %v1580
      %1618 = vmatprep.subr.bf16.mxu0 0
      %1619 = vmatpush1.bf16.msra.mxu0 %v1581
      %1620 = vmatprep.subr.bf16.mxu0 0
      %1621 = vmatpush1.bf16.msra.mxu0 %v1582
      %1622 = vmatprep.subr.bf16.mxu0 0
      %1623 = vmatpush1.bf16.msra.mxu0 0
      %1624 = vmatprep.subr.bf16.mxu0 0
      %1625 = vmatpush1.bf16.msra.mxu0 0
      %1626 = vmatprep.subr.bf16.mxu0 0
      %1627 = vmatpush1.bf16.msra.mxu0 0
      %1628 = vmatprep.subr.bf16.mxu0 0
      %1629 = vmatpush1.bf16.msra.mxu0 0
      %1630 = vmatprep.mubr.bf16.mxu0 %v1596
      %1631 = vmatmul.mubr.bf16.gmra.mrb[0].mxu0 %v1518
      %v1632 = vpop.f32.mrb[0].mxu0
      %v1633 = vadd.f32 0.0, %v1632
      %v1634 = vpop.f32.mrb[0].mxu0
      %v1635 = vpop.f32.mrb[0].mxu0
      %v1636 = vadd.f32 0.0, %v1635
      %v1637 = vpop.f32.mrb[0].mxu0
      %1638 = vdwg.mxu0
      %v1639 = vadd.f32 %v1478, %v1633
      %v1640 = vadd.f32 %v1481, %v1636
      %v1641 = vld [vmem:[%s11] sm:$0x1]
      %v1643 = vlaneseq
      %v1644 = vshrl.u32 %v1643, 7
      %v1645 = vsub.s32 0, %v1644
      %v1646 = vrot.slane %v1641, %v1645
      %v1648 = vadd.f32 %v1639, %v1646
      %v1649 = vadd.f32 %v1640, %v1646
      %v1650 = vmax.f32 %v1648, 0.0
      %v1651 = vmax.f32 %v1649, 0.0
      %vm1652 = vcmp.lt.s32.totalorder %v1091, 16
      %vm1653 = vcmp.lt.s32.totalorder %v1092, 16
      %v1654 = vsel %vm1652, 1, 0
      %v1655 = vsel %vm1653, 1, 0
      %vm1656 = vcmp.eq.s32.totalorder %v1654, 1
      %vm1657 = vcmp.eq.s32.totalorder %v1655, 1
      %v1658 = vsel %vm1656, %v1650, 0.0
      %v1659 = vsel %vm1657, %v1651, 0.0
      %vm1660 = vcmask 1040384
      %vm1661 = vsmask.f32 256
      %vm1662 = vmand %vm1660, %vm1661
      %v1663 = vld [vmem:[#allocation3] sm:$0x1]
      %v1664 = vsel %vm1662, 0, %v1663
      %1665 = vst [vmem:[#allocation3] sm:$0x1] %v1664
      %vm1666 = vsmask.f32 7938
      %vm1667 = vmand %vm1660, %vm1666
      %v1668 = vld [vmem:[#allocation3 + $0x8] sm:$0x1]
      %v1669 = vsel %vm1667, 0, %v1668
      %1670 = vst [vmem:[#allocation3 + $0x8] sm:$0x1] %v1669
      %v1671 = vpack.c.bf16 %v1659, %v1658
      %v1673 = vunpack.c.l.b16 %v1671
      %v1674 = vunpack.c.h.b16 %v1671
      %v1675 = vpack.c.b16 %v1673, %v1673
      %v1676 = vpack.c.b16 %v1674, %v1674
      %vm1677 = vsmask.f32 4368
      %vm1678 = vmor %vm1661, %vm1677
      %v1680 = vshrl.u32 %v1675, 16
      %v1682 = vrot.slane %v1680, 7
      %v1683 = vshll.u32 %v1675, 16
      %v1685 = vor.u32 %v1682, %v1683
      %v1686 = vrot.slane %v1682, 4
      %v1688 = vshrl.u32 %v1676, 16
      %v1690 = vrot.slane %v1688, 7
      %v1691 = vshll.u32 %v1676, 16
      %v1693 = vor.u32 %v1690, %v1691
      %v1694 = vsel %vm1678, %v1686, %v1693
      %v1695 = vrot.slane %v1690, 4
      %vm1699 = vcmask 1043456
      %vm1700 = vmand %vm1699, %vm1666
      %v1701 = vld [vmem:[#allocation3] sm:$0xf]
      %v1702 = vsel %vm1700, %v1685, %v1701
      %1703 = vst [vmem:[#allocation3] sm:$0xf] %v1702
      %1704 = vst [vmem:[#allocation3 + $0x4] sm:$0xf] %v1694
      %v1705 = vld [vmem:[#allocation3 + $0x8] sm:$0x1]
      %v1706 = vsel %vm1662, %v1695, %v1705
      %1707 = vst [vmem:[#allocation3 + $0x8] sm:$0x1] %v1706
      %v1708 = vld [vmem:[#allocation3] sm:$0xf]
      %v1709 = vld [vmem:[#allocation3 + $0x4] sm:$0xf]
      %v1710 = vld [vmem:[%s9] sm:$0xf]
      %v1711 = vld [vmem:[%s9 + $0x4] sm:$0xf]
      %v1712 = vld [vmem:[%s9 + $0x8] sm:$0xf]
      %v1713 = vld [vmem:[%s9 + $0xc] sm:$0xf]
      %v1714 = vld [vmem:[%s9 + $0x10] sm:$0xf]
      %v1715 = vld [vmem:[%s9 + $0x14] sm:$0xf]
      %v1716 = vld [vmem:[%s9 + $0x18] sm:$0xf]
      %v1717 = vld [vmem:[%s9 + $0x1c] sm:$0xf]
      %v1718 = vld [vmem:[%s9 + $0x20] sm:$0xf]
      %v1719 = vld [vmem:[%s9 + $0x24] sm:$0xf]
      %v1720 = vld [vmem:[%s9 + $0x28] sm:$0xf]
      %v1721 = vld [vmem:[%s9 + $0x2c] sm:$0xf]
      %v1722 = vld [vmem:[%s9 + $0x30] sm:$0xf]
      %v1723 = vld [vmem:[%s9 + $0x34] sm:$0xf]
      %v1724 = vld [vmem:[%s9 + $0x38] sm:$0xf]
      %v1725 = vld [vmem:[%s9 + $0x3c] sm:$0xf]
      %v1726 = vld [vmem:[#allocation3 + $0x8] sm:$0x1]
      %s1727 = scalar_lea.vmem %s9, 64
      %v1728 = vld [vmem:[%s1727] sm:$0xf]
      %v1729 = vld [vmem:[%s1727 + $0x4] sm:$0xf]
      %v1730 = vld [vmem:[%s1727 + $0x8] sm:$0xf]
      %v1731 = vld [vmem:[%s1727 + $0xc] sm:$0xf]
      %v1732 = vld [vmem:[%s1727 + $0x10] sm:$0xf]
      %v1733 = vld [vmem:[%s1727 + $0x14] sm:$0xf]
      %v1734 = vld [vmem:[%s1727 + $0x18] sm:$0xf]
      %v1735 = vld [vmem:[%s1727 + $0x1c] sm:$0xf]
      %v1736 = vld [vmem:[%s1727 + $0x20] sm:$0xf]
      %v1737 = vld [vmem:[%s1727 + $0x24] sm:$0xf]
      %v1738 = vld [vmem:[%s1727 + $0x28] sm:$0xf]
      %v1739 = vld [vmem:[%s1727 + $0x2c] sm:$0xf]
      %v1740 = vld [vmem:[%s1727 + $0x30] sm:$0xf]
      %v1741 = vld [vmem:[%s1727 + $0x34] sm:$0xf]
      %v1742 = vld [vmem:[%s1727 + $0x38] sm:$0xf]
      %v1743 = vld [vmem:[%s1727 + $0x3c] sm:$0xf]
      %v1747 = vunpack.c.l.b16 %v1708
      %v1748 = vunpack.c.l.b16 %v1709
      %v1749 = vunpack.c.l.b16 %v1726
      %v1750 = vpack.c.b16 %v1748, %v1747
      %v1751 = vpack.c.b16 %v1749, %v1749
      %v1753 = vshrl.u32 %v1750, 16
      %v1755 = vshll.u32 %v1750, 16
      %v1757 = vrot.slane %v1755, 1
      %v1758 = vor.u32 %v1753, %v1757
      %v1760 = vshll.u32 %v1751, 16
      %v1762 = vrot.slane %v1760, 1
      %v1763 = vsel %vm1226, %v1758, %v1762
      %v1781 = vunpack.c.l.b16 %v1728
      %v1782 = vunpack.c.l.b16 %v1729
      %v1783 = vunpack.c.l.b16 %v1730
      %v1784 = vunpack.c.l.b16 %v1731
      %v1785 = vunpack.c.l.b16 %v1732
      %v1786 = vunpack.c.l.b16 %v1733
      %v1787 = vunpack.c.l.b16 %v1734
      %v1788 = vunpack.c.l.b16 %v1735
      %v1789 = vunpack.c.l.b16 %v1736
      %v1790 = vunpack.c.l.b16 %v1737
      %v1791 = vunpack.c.l.b16 %v1738
      %v1792 = vunpack.c.l.b16 %v1739
      %v1793 = vunpack.c.l.b16 %v1740
      %v1794 = vunpack.c.l.b16 %v1741
      %v1795 = vunpack.c.l.b16 %v1742
      %v1796 = vunpack.c.l.b16 %v1743
      %v1797 = vpack.c.b16 %v1782, %v1781
      %v1798 = vpack.c.b16 %v1784, %v1783
      %v1799 = vpack.c.b16 %v1786, %v1785
      %v1800 = vpack.c.b16 %v1788, %v1787
      %v1801 = vpack.c.b16 %v1790, %v1789
      %v1802 = vpack.c.b16 %v1792, %v1791
      %v1803 = vpack.c.b16 %v1794, %v1793
      %v1804 = vpack.c.b16 %v1796, %v1795
      %1813 = vmatprep.subr.bf16.mxu0 0
      %1814 = vmatpush1.bf16.msra.mxu0 %v1797
      %1815 = vmatprep.subr.bf16.mxu0 0
      %1816 = vmatpush1.bf16.msra.mxu0 %v1798
      %1817 = vmatprep.subr.bf16.mxu0 0
      %1818 = vmatpush1.bf16.msra.mxu0 %v1799
      %1819 = vmatprep.subr.bf16.mxu0 0
      %1820 = vmatpush1.bf16.msra.mxu0 %v1800
      %1821 = vmatprep.subr.bf16.mxu0 0
      %1822 = vmatpush1.bf16.msra.mxu0 %v1801
      %1823 = vmatprep.subr.bf16.mxu0 0
      %1824 = vmatpush1.bf16.msra.mxu0 %v1802
      %1825 = vmatprep.subr.bf16.mxu0 0
      %1826 = vmatpush1.bf16.msra.mxu0 %v1803
      %1827 = vmatprep.subr.bf16.mxu0 0
      %1828 = vmatpush1.bf16.msra.mxu0 %v1804
      %1829 = vmatprep.subr.bf16.mxu0 0
      %1830 = vmatpush1.bf16.msra.mxu0 0
      %1831 = vmatprep.subr.bf16.mxu0 0
      %1832 = vmatpush1.bf16.msra.mxu0 0
      %1833 = vmatprep.subr.bf16.mxu0 0
      %1834 = vmatpush1.bf16.msra.mxu0 0
      %1835 = vmatprep.subr.bf16.mxu0 0
      %1836 = vmatpush1.bf16.msra.mxu0 0
      %1837 = vmatprep.subr.bf16.mxu0 0
      %1838 = vmatpush1.bf16.msra.mxu0 0
      %1839 = vmatprep.subr.bf16.mxu0 0
      %1840 = vmatpush1.bf16.msra.mxu0 0
      %1841 = vmatprep.subr.bf16.mxu0 0
      %1842 = vmatpush1.bf16.msra.mxu0 0
      %1843 = vmatprep.subr.bf16.mxu0 0
      %1844 = vmatpush1.bf16.msra.mxu0 0
      %1845 = vmatprep.mubr.bf16.mxu0 0
      %1846 = vmatmul.mubr.bf16.gmra.mrb[0].mxu0 %v1763
      %v1847 = vpop.f32.mrb[0].mxu0
      %v1848 = vadd.f32 0.0, %v1847
      %v1849 = vpop.f32.mrb[0].mxu0
      %v1850 = vpop.f32.mrb[0].mxu0
      %v1851 = vadd.f32 0.0, %v1850
      %v1852 = vpop.f32.mrb[0].mxu0
      %1853 = vdwg.mxu0
      %v1871 = vunpack.c.l.b16 %v1710
      %v1872 = vunpack.c.l.b16 %v1711
      %v1873 = vunpack.c.l.b16 %v1712
      %v1874 = vunpack.c.l.b16 %v1713
      %v1875 = vunpack.c.l.b16 %v1714
      %v1876 = vunpack.c.l.b16 %v1715
      %v1877 = vunpack.c.l.b16 %v1716
      %v1878 = vunpack.c.l.b16 %v1717
      %v1879 = vunpack.c.l.b16 %v1718
      %v1880 = vunpack.c.l.b16 %v1719
      %v1881 = vunpack.c.l.b16 %v1720
      %v1882 = vunpack.c.l.b16 %v1721
      %v1883 = vunpack.c.l.b16 %v1722
      %v1884 = vunpack.c.l.b16 %v1723
      %v1885 = vunpack.c.l.b16 %v1724
      %v1886 = vunpack.c.l.b16 %v1725
      %v1887 = vpack.c.b16 %v1872, %v1871
      %v1888 = vpack.c.b16 %v1874, %v1873
      %v1889 = vpack.c.b16 %v1876, %v1875
      %v1890 = vpack.c.b16 %v1878, %v1877
      %v1891 = vpack.c.b16 %v1880, %v1879
      %v1892 = vpack.c.b16 %v1882, %v1881
      %v1893 = vpack.c.b16 %v1884, %v1883
      %v1894 = vpack.c.b16 %v1886, %v1885
      %1903 = vmatprep.subr.bf16.mxu0 0
      %1904 = vmatpush1.bf16.msra.mxu0 %v1887
      %1905 = vmatprep.subr.bf16.mxu0 0
      %1906 = vmatpush1.bf16.msra.mxu0 %v1888
      %1907 = vmatprep.subr.bf16.mxu0 0
      %1908 = vmatpush1.bf16.msra.mxu0 %v1889
      %1909 = vmatprep.subr.bf16.mxu0 0
      %1910 = vmatpush1.bf16.msra.mxu0 %v1890
      %1911 = vmatprep.subr.bf16.mxu0 0
      %1912 = vmatpush1.bf16.msra.mxu0 %v1891
      %1913 = vmatprep.subr.bf16.mxu0 0
      %1914 = vmatpush1.bf16.msra.mxu0 %v1892
      %1915 = vmatprep.subr.bf16.mxu0 0
      %1916 = vmatpush1.bf16.msra.mxu0 %v1893
      %1917 = vmatprep.subr.bf16.mxu0 0
      %1918 = vmatpush1.bf16.msra.mxu0 %v1894
      %1919 = vmatprep.subr.bf16.mxu0 0
      %1920 = vmatpush1.bf16.msra.mxu0 0
      %1921 = vmatprep.subr.bf16.mxu0 0
      %1922 = vmatpush1.bf16.msra.mxu0 0
      %1923 = vmatprep.subr.bf16.mxu0 0
      %1924 = vmatpush1.bf16.msra.mxu0 0
      %1925 = vmatprep.subr.bf16.mxu0 0
      %1926 = vmatpush1.bf16.msra.mxu0 0
      %1927 = vmatprep.subr.bf16.mxu0 0
      %1928 = vmatpush1.bf16.msra.mxu0 0
      %1929 = vmatprep.subr.bf16.mxu0 0
      %1930 = vmatpush1.bf16.msra.mxu0 0
      %1931 = vmatprep.subr.bf16.mxu0 0
      %1932 = vmatpush1.bf16.msra.mxu0 0
      %1933 = vmatprep.subr.bf16.mxu0 0
      %1934 = vmatpush1.bf16.msra.mxu0 0
      %1935 = vmatprep.mubr.bf16.mxu0 0
      %1936 = vmatmul.mubr.bf16.gmra.mrb[0].mxu0 %v1750
      %v1937 = vpop.f32.mrb[0].mxu0
      %v1938 = vadd.f32 %v1848, %v1937
      %v1939 = vpop.f32.mrb[0].mxu0
      %v1940 = vpop.f32.mrb[0].mxu0
      %v1941 = vadd.f32 %v1851, %v1940
      %v1942 = vpop.f32.mrb[0].mxu0
      %1943 = vdwg.mxu0
      %v1944 = vld [vmem:[#allocation3] sm:$0xe]
      %s1945 = scalar_lea.vmem %s9, 128
      %v1946 = vld [vmem:[%s1945] sm:$0xf]
      %v1947 = vld [vmem:[%s1945 + $0x4] sm:$0xf]
      %v1948 = vld [vmem:[%s1945 + $0x8] sm:$0xf]
      %v1949 = vld [vmem:[%s1945 + $0xc] sm:$0xf]
      %v1950 = vld [vmem:[%s1945 + $0x10] sm:$0xf]
      %v1951 = vld [vmem:[%s1945 + $0x14] sm:$0xf]
      %v1952 = vld [vmem:[%s1945 + $0x18] sm:$0xf]
      %v1953 = vld [vmem:[%s1945 + $0x1c] sm:$0xf]
      %v1954 = vld [vmem:[%s1945 + $0x20] sm:$0xf]
      %v1955 = vld [vmem:[%s1945 + $0x24] sm:$0xf]
      %v1956 = vld [vmem:[%s1945 + $0x28] sm:$0xf]
      %v1957 = vld [vmem:[%s1945 + $0x2c] sm:$0xf]
      %v1958 = vld [vmem:[%s1945 + $0x30] sm:$0xf]
      %v1959 = vld [vmem:[%s1945 + $0x34] sm:$0xf]
      %v1960 = vld [vmem:[%s1945 + $0x38] sm:$0xf]
      %v1961 = vld [vmem:[%s1945 + $0x3c] sm:$0xf]
      %v1963 = vunpack.c.l.b16 %v1944
      %v1964 = vpack.c.b16 %v1748, %v1963
      %v1965 = vrot.slane %v1964, 1
      %v1966 = vrot.slane %v1751, 1
      %v1967 = vsel %vm1515, %v1965, %v1966
      %v1985 = vunpack.c.l.b16 %v1946
      %v1986 = vunpack.c.l.b16 %v1947
      %v1987 = vunpack.c.l.b16 %v1948
      %v1988 = vunpack.c.l.b16 %v1949
      %v1989 = vunpack.c.l.b16 %v1950
      %v1990 = vunpack.c.l.b16 %v1951
      %v1991 = vunpack.c.l.b16 %v1952
      %v1992 = vunpack.c.l.b16 %v1953
      %v1993 = vunpack.c.l.b16 %v1954
      %v1994 = vunpack.c.l.b16 %v1955
      %v1995 = vunpack.c.l.b16 %v1956
      %v1996 = vunpack.c.l.b16 %v1957
      %v1997 = vunpack.c.l.b16 %v1958
      %v1998 = vunpack.c.l.b16 %v1959
      %v1999 = vunpack.c.l.b16 %v1960
      %v2000 = vunpack.c.l.b16 %v1961
      %v2001 = vpack.c.b16 %v1986, %v1985
      %v2002 = vpack.c.b16 %v1988, %v1987
      %v2003 = vpack.c.b16 %v1990, %v1989
      %v2004 = vpack.c.b16 %v1992, %v1991
      %v2005 = vpack.c.b16 %v1994, %v1993
      %v2006 = vpack.c.b16 %v1996, %v1995
      %v2007 = vpack.c.b16 %v1998, %v1997
      %v2008 = vpack.c.b16 %v2000, %v1999
      %2017 = vmatprep.subr.bf16.mxu0 0
      %2018 = vmatpush1.bf16.msra.mxu0 %v2001
      %2019 = vmatprep.subr.bf16.mxu0 0
      %2020 = vmatpush1.bf16.msra.mxu0 %v2002
      %2021 = vmatprep.subr.bf16.mxu0 0
      %2022 = vmatpush1.bf16.msra.mxu0 %v2003
      %2023 = vmatprep.subr.bf16.mxu0 0
      %2024 = vmatpush1.bf16.msra.mxu0 %v2004
      %2025 = vmatprep.subr.bf16.mxu0 0
      %2026 = vmatpush1.bf16.msra.mxu0 %v2005
      %2027 = vmatprep.subr.bf16.mxu0 0
      %2028 = vmatpush1.bf16.msra.mxu0 %v2006
      %2029 = vmatprep.subr.bf16.mxu0 0
      %2030 = vmatpush1.bf16.msra.mxu0 %v2007
      %2031 = vmatprep.subr.bf16.mxu0 0
      %2032 = vmatpush1.bf16.msra.mxu0 %v2008
      %2033 = vmatprep.subr.bf16.mxu0 0
      %2034 = vmatpush1.bf16.msra.mxu0 0
      %2035 = vmatprep.subr.bf16.mxu0 0
      %2036 = vmatpush1.bf16.msra.mxu0 0
      %2037 = vmatprep.subr.bf16.mxu0 0
      %2038 = vmatpush1.bf16.msra.mxu0 0
      %2039 = vmatprep.subr.bf16.mxu0 0
      %2040 = vmatpush1.bf16.msra.mxu0 0
      %2041 = vmatprep.subr.bf16.mxu0 0
      %2042 = vmatpush1.bf16.msra.mxu0 0
      %2043 = vmatprep.subr.bf16.mxu0 0
      %2044 = vmatpush1.bf16.msra.mxu0 0
      %2045 = vmatprep.subr.bf16.mxu0 0
      %2046 = vmatpush1.bf16.msra.mxu0 0
      %2047 = vmatprep.subr.bf16.mxu0 0
      %2048 = vmatpush1.bf16.msra.mxu0 0
      %2049 = vmatprep.mubr.bf16.mxu0 0
      %2050 = vmatmul.mubr.bf16.gmra.mrb[0].mxu0 %v1967
      %v2051 = vpop.f32.mrb[0].mxu0
      %v2052 = vadd.f32 0.0, %v2051
      %v2053 = vpop.f32.mrb[0].mxu0
      %v2054 = vpop.f32.mrb[0].mxu0
      %v2055 = vadd.f32 0.0, %v2054
      %v2056 = vpop.f32.mrb[0].mxu0
      %2057 = vdwg.mxu0
      %v2058 = vadd.f32 %v1938, %v2052
      %v2059 = vadd.f32 %v1941, %v2055
      %v2060 = vld [vmem:[%s12] sm:$0x1]
      %v2062 = vlaneseq
      %v2063 = vshrl.u32 %v2062, 7
      %v2064 = vsub.s32 0, %v2063
      %v2065 = vrot.slane %v2060, %v2064
      %v2067 = vadd.f32 %v2058, %v2065
      %v2068 = vadd.f32 %v2059, %v2065
      %v2069 = vmax.f32 %v2067, 0.0
      %v2070 = vmax.f32 %v2068, 0.0
      %2071 = vst [vmem:[%s459] sm:$0xff] %v2069
      %2072 = vst [vmem:[%s459 + $0x8] sm:$0xff] %v2070
      %s2073 = smul.u32 2, %s24
      %p2074 = scmp.lt.s32.totalorder %s2073, 3
      %s2075 = scalar_select %p2074, %s2073, 3
      %s2076 = smul.addr %s2075, 8
      %s2077 = scalar_lea.vmem %s13, %s2076
      // Predicated region
      $region73: #{_lambda_.1} parent=71 // pred_check
        %p2078 = pneg %p325
      $region74: #{_lambda_.1} parent=71 // pred_check_branch
        %2080 = sbr.rel (%p2078) target = $region76
      $region75: #{_lambda_.1} parent=71 // pred_region
        %s2081 = smul.u32 2, %s24
      $region76: #{_lambda_.1} parent=71 // pred_fallthru
        _
    $region72: #{_lambda_.1} parent=5 // pred_fallthru
      _
    %p2082 = scmp.le.s32.totalorder 2, %s19
    // Predicated region
    $region77: #{_lambda_.1} parent=5 // pred_check
      %p2083 = pneg %p2082
    $region78: #{_lambda_.1} parent=5 // pred_check_branch
      %2085 = sbr.rel (%p2083) target = $region80
    $region79: #{_lambda_.1} parent=5 // pred_region
      %s2086 = ssub.s32 %s19, 2
      // Predicated region
      $region81: #{_lambda_.1} parent=79 // pred_check
        %p2087 = pneg %p331
      $region82: #{_lambda_.1} parent=79 // pred_check_branch
        %2089 = sbr.rel (%p2087) target = $region84
      $region83: #{_lambda_.1} parent=79 // pred_region
        %s2090 = smul.u32 2, %s25
        %p2091 = scmp.lt.s32.totalorder %s2090, 3
        %s2092 = scalar_select %p2091, %s2090, 3
        %s2093 = smul.addr %s2092, 8
        %s2094 = scalar_lea.vmem %s13, %s2093
      $region84: #{_lambda_.1} parent=79 // pred_fallthru
        _
    $region80: #{_lambda_.1} parent=5 // pred_fallthru
      _
  $region6: #{_lambda_.1} parent=0 // loop_footer
    %s23 = sadd.s32 1, %s19
  $region7: #{_lambda_.1} parent=0 // loop_footer_branch
    %18 = sbr.rel target = $region3
  $region8: #{_lambda_.1} parent=0 // loop_exit
    _

</llo_original>
